<compile_context>
chip_gen: v6e
topology: v6e:2x2x1
jax: 0.10.0
libtpu: 0.0.40
codegen_flags: <defaults>
</compile_context>

<pallas_src>
import jax
import jax.numpy as jnp
from jax.experimental import pallas as pl
from jax.experimental.pallas import tpu as pltpu


def _vmem_limit_bytes():
    # Generation-aware scoped-VMEM budget: ~3/4 of physical VMEM
    # (v5e/v6e 128 MiB -> 96 MiB, v7x 64 MiB -> 48 MiB); safe fallback 48 MiB.
    try:
        cap = int(getattr(pltpu.get_tpu_info(), "vmem_capacity_bytes",
                          64 * 1024 * 1024))
    except Exception:
        cap = 64 * 1024 * 1024
    return int(min(cap * 3 // 4, 100 * 1024 * 1024))


def _pick_recurrent_time_block(T, target=8):
    for k in range(min(target, T), 0, -1):
        if T % k == 0:
            return k
    return 1


def _pick_parallel_time_block(T, B, target_rows=256):
    # TV must divide T and satisfy the (8,128) block-tiling constraint on the
    # second-to-last block dim (TV == T or TV % 8 == 0).  Prefer the smallest
    # TV with TV*B >= target_rows so the kernel-2 matmuls fill the MXU rows.
    valid = [k for k in range(1, T + 1)
             if T % k == 0 and (k == T or k % 8 == 0)]
    for k in valid:
        if k * B >= target_rows:
            return k
    return valid[-1]


def _full_spec(arr):
    zeros = (0,) * arr.ndim
    return pl.BlockSpec(arr.shape, lambda t, _z=zeros: _z)


# -----------------------------------------------------------------------------
# Kernel 1: LSTM recurrence only.  grid = (T // TB,), sequential ("arbitrary").
# -----------------------------------------------------------------------------
def lstm_recurrence_kernel(gates_in_ref,   # (TB, B, 4H) f32  precomputed x@W_ih+b
                           h0_ref, c0_ref,  # (B, H) f32      initial state
                           w_hh_ref,        # (H, 4H) bf16
                           h_out_ref,       # (TB, B, H) f32
                           h_state, c_state):
    @pl.when(pl.program_id(0) == 0)
    def _():
        h_state[...] = h0_ref[...]
        c_state[...] = c0_ref[...]

    H = h_state.shape[1]
    TB = gates_in_ref.shape[0]

    def step(i, carry):
        h_prev, c_prev = carry
        # PyTorch gate order i, f, g, o; bias already folded into gates_in.
        gates = gates_in_ref[i] + jnp.dot(
            h_prev.astype(jnp.bfloat16), w_hh_ref[...],
            preferred_element_type=jnp.float32)                      # (B, 4H)
        i_g = jax.nn.sigmoid(gates[:, 0 * H:1 * H])
        f_g = jax.nn.sigmoid(gates[:, 1 * H:2 * H])
        g_g = jnp.tanh(gates[:, 2 * H:3 * H])
        o_g = jax.nn.sigmoid(gates[:, 3 * H:4 * H])
        c_new = f_g * c_prev + i_g * g_g
        h_new = o_g * jnp.tanh(c_new)
        h_out_ref[i] = h_new
        return (h_new, c_new)

    h_fin, c_fin = jax.lax.fori_loop(
        0, TB, step, (h_state[...], c_state[...]), unroll=True)
    h_state[...] = h_fin
    c_state[...] = c_fin


def run_lstm_recurrence(gates_in_tm, h0, c0, w_hh, time_block):
    T, B, G = gates_in_tm.shape
    H = h0.shape[1]
    TB = time_block
    w_hh_bf = w_hh.astype(jnp.bfloat16)
    # TODO(synk): the time-invariant full-array inputs (h0, c0, w_hh) could be
    # single-buffered with pipeline_mode=pl.Buffered(1) to save VMEM on v7x.
    return pl.pallas_call(
        lstm_recurrence_kernel,
        out_shape=jax.ShapeDtypeStruct((T, B, H), jnp.float32),
        grid=(T // TB,),
        in_specs=[pl.BlockSpec((TB, B, G), lambda t: (t, 0, 0)),
                  _full_spec(h0), _full_spec(c0), _full_spec(w_hh_bf)],
        out_specs=pl.BlockSpec((TB, B, H), lambda t: (t, 0, 0)),
        scratch_shapes=[pltpu.VMEM((B, H), jnp.float32),
                        pltpu.VMEM((B, H), jnp.float32)],
        compiler_params=pltpu.CompilerParams(
            dimension_semantics=("arbitrary",),     # true time recurrence
            vmem_limit_bytes=_vmem_limit_bytes()),
    )(gates_in_tm, h0, c0, w_hh_bf)


# -----------------------------------------------------------------------------
# Kernel 2: attention + switcher + p_gen + vocab softmax + copy mixture.
# grid = (T // TV,), parallel over T-tiles.  Blocks are batch-major (B, TV, .)
# so the attention / copy contractions are leading-batch MXU einsums and the
# outputs land directly in the (B, T, .) layout the module returns.
# -----------------------------------------------------------------------------
def attention_pointer_kernel(
    h_ref,            # (B, TV, H)  f32
    yemb_ref,         # (B, TV, E)  bf16
    ymask_ref,        # (B, TV, 1)  f32
    enc_ref,          # (B, S, H)   bf16
    encp_ref,         # (B, S, A)   f32   precomputed enc @ W_enc
    x_mask_ref,       # (B, S)      f32
    ptr_ref,          # (B, S)      int32
    w_dec_ref,        # (H, A)      bf16
    v_att_ref,        # (1, A)      f32
    w_swt_ref,        # (2H, Hs)    bf16  [W_swt_h; W_swt_c]
    b_swt_ref,        # (1, Hs)     f32
    w_pg_ref,         # (2H+E, 1)   f32   [w_pg_c; w_pg_h; w_pg_y]
    b_pg_ref,         # (1, 1)      f32
    w_vocab_ref,      # (Hs, V)     bf16
    b_vocab_ref,      # (1, V)      f32
    proba_ref,        # (B, TV, V)  f32
    alpha_ref,        # (B, TV, S)  f32
    swt_ref,          # (B, TV, Hs) f32
):
    f32 = jnp.float32
    bf16 = jnp.bfloat16
    B, TV, H = h_ref.shape
    S = enc_ref.shape[1]
    A = w_dec_ref.shape[1]
    E = yemb_ref.shape[2]
    Hs = w_swt_ref.shape[1]
    V = w_vocab_ref.shape[1]
    R = B * TV

    h = h_ref[...]                                       # (B, TV, H) f32
    h2 = h.reshape(R, H)
    h2_bf = h2.astype(bf16)

    # ---------------- additive (Bahdanau) attention --------------------------
    dec_proj = jnp.dot(h2_bf, w_dec_ref[...],
                       preferred_element_type=f32).reshape(B, TV, A)
    # TODO(synk): on v6e/v7x the feature tanh could run in bf16 for ~2x VPU/EUP
    # throughput; kept f32 here to match the reference numerics on all gens.
    feat = jnp.tanh(encp_ref[...][:, None, :, :]
                    + dec_proj[:, :, None, :])            # (B, TV, S, A)
    scores = jnp.sum(feat * v_att_ref[...], axis=-1)      # (B, TV, S)
    xm = x_mask_ref[...][:, None, :]                      # (B, 1, S)
    scores = jnp.where(xm > 0.0, scores, -1e30)
    m = jnp.max(scores, axis=-1, keepdims=True)
    e = jnp.exp(scores - m) * xm
    alpha = e * pl.reciprocal(jnp.sum(e, axis=-1, keepdims=True) + 1e-9,
                              approx=True)                # (B, TV, S)
    alpha_ref[...] = alpha

    alpha_bf = alpha.astype(bf16)
    ctx = jnp.einsum('bts,bsh->bth', alpha_bf, enc_ref[...],
                     preferred_element_type=f32)          # (B, TV, H)
    ctx2 = ctx.reshape(R, H)

    # ---------------- switcher hidden (fused [h|ctx] matmul) -----------------
    hc_bf = jnp.concatenate([h2, ctx2], axis=-1).astype(bf16)        # (R, 2H)
    swt_h = jnp.tanh(jnp.dot(hc_bf, w_swt_ref[...],
                             preferred_element_type=f32)
                     + b_swt_ref[...])                                # (R, Hs)

    # ---------------- p_gen: one fused MXU dot on concat([ctx,h,y]) ----------
    y2 = yemb_ref[...].astype(f32).reshape(R, E)
    pg_in = jnp.concatenate([ctx2, h2, y2], axis=-1)                  # (R,2H+E)
    p_gen = jax.nn.sigmoid(jnp.dot(pg_in, w_pg_ref[...],
                                   preferred_element_type=f32)
                           + b_pg_ref[...])                           # (R, 1)
    p_gen = p_gen.reshape(B, TV, 1)

    # ---------------- vocab distribution (exact softmax -> feeds NLL) --------
    logits = jnp.dot(swt_h.astype(bf16), w_vocab_ref[...],
                     preferred_element_type=f32) + b_vocab_ref[...]   # (R, V)
    m2 = jnp.max(logits, axis=-1, keepdims=True)
    e2 = jnp.exp(logits - m2)
    dist = (e2 / jnp.sum(e2, axis=-1, keepdims=True)).reshape(B, TV, V)

    # ---------------- copy distribution: one-hot matmul on the MXU -----------
    # (replaces the dense (T,B,V) HBM intermediate + serialized scatter)
    ids = jax.lax.broadcasted_iota(jnp.int32, (B, S, V), 2)
    onehot = (ptr_ref[...][:, :, None] == ids).astype(bf16)           # (B,S,V)
    copy = jnp.einsum('bts,bsv->btv', alpha_bf, onehot,
                      preferred_element_type=f32)                     # (B,TV,V)
    # TODO(synk): for production vocab sizes on v7x (64 MiB VMEM) add a V grid
    # axis with a two-pass softmax so (Hs,V), (B,S,Vtile) and (B,TV,Vtile)
    # tiles stay within budget.

    ym = ymask_ref[...]                                               # (B,TV,1)
    proba_ref[...] = (p_gen * dist + (1.0 - p_gen) * copy) * ym
    swt_ref[...] = swt_h.reshape(B, TV, Hs) * ym


def run_attention_pointer(p2, h_bt, yemb_bt, ymask_bt1, enc, enc_proj,
                          x_mask, pointer, time_block):
    B, T, H = h_bt.shape
    S = enc.shape[1]
    E = yemb_bt.shape[2]
    Hs = p2['w_swt_cat'].shape[1]
    V = p2['w_vocab'].shape[1]
    TV = time_block
    bf = jnp.bfloat16

    def tspec(feat):
        return pl.BlockSpec((B, TV, feat), lambda t: (0, t, 0))

    in_arrays = [
        h_bt, yemb_bt.astype(bf), ymask_bt1,
        enc.astype(bf), enc_proj, x_mask, pointer,
        p2['w_dec'].astype(bf), p2['v_att'],
        p2['w_swt_cat'].astype(bf), p2['b_swt'],
        p2['w_pg_cat'], p2['b_pg'],
        p2['w_vocab'].astype(bf), p2['b_vocab'],
    ]
    in_specs = ([tspec(H), tspec(E), tspec(1)]
                + [_full_spec(a) for a in in_arrays[3:]])

    out_shape = (
        jax.ShapeDtypeStruct((B, T, V), jnp.float32),
        jax.ShapeDtypeStruct((B, T, S), jnp.float32),
        jax.ShapeDtypeStruct((B, T, Hs), jnp.float32),
    )
    out_specs = (tspec(V), tspec(S), tspec(Hs))

    return pl.pallas_call(
        attention_pointer_kernel,
        out_shape=out_shape,
        grid=(T // TV,),
        in_specs=in_specs,
        out_specs=out_specs,
        compiler_params=pltpu.CompilerParams(
            dimension_semantics=("parallel",),   # T-tiles are independent
            vmem_limit_bytes=_vmem_limit_bytes()),
    )(*in_arrays)


# -----------------------------------------------------------------------------
# Decoder wrapper (teacher-forcing training path).
# -----------------------------------------------------------------------------
class PallasDecoder:
    def __init__(self, key, vocab_size, embed_dim, hidden_dim, attn_dim,
                 swt_dim, apply_attn_cost=False):
        self.apply_attn_cost = apply_attn_cost
        V, E, H, A, Hs = vocab_size, embed_dim, hidden_dim, attn_dim, swt_dim
        ks = jax.random.split(key, 16)
        s = 0.1  # small deterministic init keeps nonlinearities unsaturated
        self.params = {
            'embedding': jax.random.normal(ks[0], (V, E), jnp.float32) * s,
            'w_ih': jax.random.normal(ks[1], (E, 4 * H), jnp.float32) * s,
            'w_hh': jax.random.normal(ks[2], (H, 4 * H), jnp.float32) * s,
            'b_lstm': jnp.zeros((1, 4 * H), jnp.float32),   # = b_ih + b_hh
            'w_enc': jax.random.normal(ks[3], (H, A), jnp.float32) * s,
            'w_dec': jax.random.normal(ks[4], (H, A), jnp.float32) * s,
            'v_att': jax.random.normal(ks[5], (1, A), jnp.float32) * s,
            'w_swt_h': jax.random.normal(ks[6], (H, Hs), jnp.float32) * s,
            'w_swt_c': jax.random.normal(ks[7], (H, Hs), jnp.float32) * s,
            'b_swt': jnp.zeros((1, Hs), jnp.float32),
            'w_vocab': jax.random.normal(ks[8], (Hs, V), jnp.float32) * s,
            'b_vocab': jnp.zeros((1, V), jnp.float32),
            'w_pg_c': jax.random.normal(ks[9], (1, H), jnp.float32) * s,
            'w_pg_h': jax.random.normal(ks[10], (1, H), jnp.float32) * s,
            'w_pg_y': jax.random.normal(ks[11], (1, E), jnp.float32) * s,
            'b_pg': jnp.zeros((1, 1), jnp.float32),
        }

    def train_forward(self, inputs):
        y = inputs['y']                     # (B, T) int32
        y_mask = inputs['y_mask']           # (B, T) float
        x_mask = inputs['x_mask']           # (B, S) float
        h0, c0 = inputs['s_t_1']            # each (1, B, H) like torch LSTM state
        h0, c0 = h0[0], c0[0]
        enc = inputs['encoder_outputs']     # (B, S, H)
        pointer = inputs['pointer']         # (B, S) int32 -> vocab ids for copy
        p = self.params
        B, T = y.shape

        # Plain-JAX glue: embedding gather + the two time-invariant projections
        # hoisted out of the recurrence (full-occupancy matmuls).
        y_emb = p['embedding'][y]                                       # (B,T,E)
        gates_in_tm = (jnp.einsum('bte,eg->tbg', y_emb, p['w_ih'])
                       + p['b_lstm'])                                   # (T,B,4H)
        enc_proj = jnp.einsum('bsh,ha->bsa', enc, p['w_enc'])           # (B,S,A)

        # Kernel 1: serial LSTM cell only.
        tb = _pick_recurrent_time_block(T)
        h_tm = run_lstm_recurrence(gates_in_tm, h0, c0, p['w_hh'], tb)  # (T,B,H)
        h_bt = jnp.transpose(h_tm, (1, 0, 2))                           # (B,T,H)

        # Kernel 2: everything non-recurrent, T-parallel.
        p2 = {
            'w_dec': p['w_dec'], 'v_att': p['v_att'],
            'w_swt_cat': jnp.concatenate([p['w_swt_h'], p['w_swt_c']], axis=0),
            'b_swt': p['b_swt'],
            'w_pg_cat': jnp.concatenate(
                [p['w_pg_c'], p['w_pg_h'], p['w_pg_y']], axis=1).T,
            'b_pg': p['b_pg'],
            'w_vocab': p['w_vocab'], 'b_vocab': p['b_vocab'],
        }
        tv = _pick_parallel_time_block(T, B)
        probas, alpha_bt, swt_bt = run_attention_pointer(
            p2, h_bt, y_emb, y_mask[..., None], enc, enc_proj,
            x_mask, pointer, tv)
        # probas / swt_bt already multiplied by y_mask inside the kernel.

        h_ts = h_bt * y_mask[..., None]                                 # (B,T,H)
        alphas = jnp.transpose(alpha_bt, (1, 0, 2))                     # (T,B,S)

        # Masked NLL via gather — plain JAX (no dense one-hot, no extra launch).
        p_tgt = jnp.take_along_axis(probas, y[..., None], axis=-1)[..., 0]
        pred_cost = (jnp.sum(-jnp.log(p_tgt + 1e-10) * y_mask)
                     / jnp.sum(y_mask))
        att_cost = jnp.float32(0.0)
        # TODO(synk): attn_cost coverage regularizer (apply_attn_cost=True),
        # predictive/<unk> scheduled-sampling forcing, generator beam search
        # and the OOV-extended batch_vocab of test_forward are host-side
        # control flow with no clean Pallas equivalent.

        return ({'alpha': alphas, 'proba': probas, 'h_ts': h_ts,
                 'last_h_ts': swt_bt},
                {'pred_cost': pred_cost, 'att_cost': att_cost})


# -----------------------------------------------------------------------------
if __name__ == "__main__":
    key = jax.random.PRNGKey(0)
    # Lane-dense shapes: feature dims multiples of 128, batch multiple of 8.
    B, T, S = 8, 8, 128
    V, E, H, A, Hs = 256, 128, 128, 128, 128
    ks = jax.random.split(key, 8)

    y = jax.random.randint(ks[0], (B, T), 0, V, dtype=jnp.int32)
    y_mask = jnp.ones((B, T), jnp.float32).at[1, T - 2:].set(0.0)
    x_mask = jnp.ones((B, S), jnp.float32).at[0, S - 40:].set(0.0)
    enc = jax.random.normal(ks[1], (B, S, H), jnp.float32) * 0.5
    pointer = jax.random.randint(ks[2], (B, S), 0, V, dtype=jnp.int32)
    h0 = jax.random.normal(ks[3], (1, B, H), jnp.float32) * 0.1
    c0 = jax.random.normal(ks[4], (1, B, H), jnp.float32) * 0.1

    decoder = PallasDecoder(ks[5], V, E, H, A, Hs, apply_attn_cost=False)
    inputs = {
        'y': y, 'y_mask': y_mask, 'x_mask': x_mask,
        's_t_1': (h0, c0), 'encoder_outputs': enc,
        'batch_vocab': None, 'pointer': pointer,
    }

    outs, costs = decoder.train_forward(inputs)
    jax.block_until_ready((outs, costs))

    # sanity: probability rows sum to 1 where y_mask==1 (0 where masked),
    # attention rows sum to 1, loss finite.  (1e-2 tolerance: approx recip for
    # alpha + bf16 matmul operands.)
    psum = jnp.sum(outs['proba'], axis=-1)
    assert bool(jnp.all(jnp.abs(psum - y_mask) < 1e-2)), "proba not normalized"
    asum = jnp.sum(outs['alpha'], axis=-1)
    assert bool(jnp.all(jnp.abs(asum - 1.0) < 1e-2)), "alpha not normalized"
    assert bool(jnp.isfinite(costs['pred_cost'])), "pred_cost not finite"
    assert outs['h_ts'].shape == (B, T, H)
    assert outs['last_h_ts'].shape == (B, T, Hs)
    assert outs['alpha'].shape == (T, B, S)
    assert outs['proba'].shape == (B, T, V)

    print("KERNEL_OK")
</pallas_src>

<mosaic_0001>
module attributes {stable_mosaic.version = 11 : i64} {
  func.func @lstm_recurrence_kernel(%arg0: i32, %arg1: memref<8x8x512xf32, #tpu.memory_space<vmem>>, %arg2: memref<8x128xf32, #tpu.memory_space<vmem>>, %arg3: memref<8x128xf32, #tpu.memory_space<vmem>>, %arg4: memref<128x512xbf16, #tpu.memory_space<vmem>>, %arg5: memref<8x8x128xf32, #tpu.memory_space<vmem>>, %arg6: memref<8x128xf32, #tpu.memory_space<vmem>>, %arg7: memref<8x128xf32, #tpu.memory_space<vmem>>) attributes {dimension_semantics = [#tpu.dimension_semantics<arbitrary>], iteration_bounds = array<i64: 1>, scalar_prefetch = 0 : i64, scratch_operands = 2 : i64, tpu.core_type = #tpu.core_type<tc>, window_params = [{transform_indices = @transform_0, window_bounds = array<i64: 8, 8, 512>}, {pipeline_mode = #tpu.pipeline_mode<synchronous>, transform_indices = @transform_1, window_bounds = array<i64: 8, 128>}, {pipeline_mode = #tpu.pipeline_mode<synchronous>, transform_indices = @transform_2, window_bounds = array<i64: 8, 128>}, {pipeline_mode = #tpu.pipeline_mode<synchronous>, transform_indices = @transform_3, window_bounds = array<i64: 128, 512>}, {transform_indices = @transform_4, window_bounds = array<i64: 8, 8, 128>}]} {
    %c0_i32 = arith.constant 0 : i32
    %0 = arith.cmpi eq, %arg0, %c0_i32 : i32
    %1 = arith.extui %0 : i1 to i32
    %c0_i32_0 = arith.constant 0 : i32
    %2 = arith.cmpi ne, %1, %c0_i32_0 : i32
    scf.if %2 {
      %c0_88 = arith.constant 0 : index
      %c0_89 = arith.constant 0 : index
      %295 = vector.load %arg2[%c0_88, %c0_89] : memref<8x128xf32, #tpu.memory_space<vmem>>, vector<8x128xf32>
      %c0_90 = arith.constant 0 : index
      %c0_91 = arith.constant 0 : index
      %296 = vector.load %arg6[%c0_90, %c0_91] : memref<8x128xf32, #tpu.memory_space<vmem>>, vector<8x128xf32>
      tpu.vector_store %arg6[%c0_90, %c0_91], %295 {strides = array<i32>} : memref<8x128xf32, #tpu.memory_space<vmem>>, vector<8x128xf32>,
      %c0_92 = arith.constant 0 : index
      %c0_93 = arith.constant 0 : index
      %297 = vector.load %arg3[%c0_92, %c0_93] : memref<8x128xf32, #tpu.memory_space<vmem>>, vector<8x128xf32>
      %c0_94 = arith.constant 0 : index
      %c0_95 = arith.constant 0 : index
      %298 = vector.load %arg7[%c0_94, %c0_95] : memref<8x128xf32, #tpu.memory_space<vmem>>, vector<8x128xf32>
      tpu.vector_store %arg7[%c0_94, %c0_95], %297 {strides = array<i32>} : memref<8x128xf32, #tpu.memory_space<vmem>>, vector<8x128xf32>,
    } else {
    }
    %c0 = arith.constant 0 : index
    %c0_1 = arith.constant 0 : index
    %3 = vector.load %arg6[%c0, %c0_1] : memref<8x128xf32, #tpu.memory_space<vmem>>, vector<8x128xf32>
    %c0_2 = arith.constant 0 : index
    %c0_3 = arith.constant 0 : index
    %4 = vector.load %arg7[%c0_2, %c0_3] : memref<8x128xf32, #tpu.memory_space<vmem>>, vector<8x128xf32>
    %c0_i32_4 = arith.constant 0 : i32
    %5 = arith.index_cast %c0_i32_4 : i32 to index
    %c0_5 = arith.constant 0 : index
    %c0_6 = arith.constant 0 : index
    %6 = vector.load %arg1[%5, %c0_5, %c0_6] : memref<8x8x512xf32, #tpu.memory_space<vmem>>, vector<1x8x512xf32>
    %7 = vector.shape_cast %6 : vector<1x8x512xf32> to vector<8x512xf32>
    %8 = arith.truncf %3 : vector<8x128xf32> to vector<8x128xbf16>
    %c0_7 = arith.constant 0 : index
    %c0_8 = arith.constant 0 : index
    %9 = vector.load %arg4[%c0_7, %c0_8] : memref<128x512xbf16, #tpu.memory_space<vmem>>, vector<128x512xbf16>
    %cst = arith.constant dense<0.000000e+00> : vector<8x512xf32>
    %10 = tpu.matmul %8, %9, %cst {dimension_numbers = #tpu.dot_dimension_numbers<[1], [0], [0], [1], [0, 0, 1, 1], [], []>} : vector<8x128xbf16>, vector<128x512xbf16>, vector<8x512xf32> -> vector<8x512xf32>
    %11 = arith.addf %7, %10 : vector<8x512xf32>
    %12 = vector.extract_strided_slice %11 {offsets = [0, 0], sizes = [8, 128], strides = [1, 1]} : vector<8x512xf32> to vector<8x128xf32>
    %13 = arith.negf %12 : vector<8x128xf32>
    %14 = math.exp %13 : vector<8x128xf32>
    %cst_9 = arith.constant 1.000000e+00 : f32
    %15 = vector.broadcast %cst_9 : f32 to vector<8x128xf32>
    %16 = arith.addf %15, %14 : vector<8x128xf32>
    %17 = arith.divf %15, %16 : vector<8x128xf32>
    %18 = vector.extract_strided_slice %11 {offsets = [0, 128], sizes = [8, 128], strides = [1, 1]} : vector<8x512xf32> to vector<8x128xf32>
    %19 = arith.negf %18 : vector<8x128xf32>
    %20 = math.exp %19 : vector<8x128xf32>
    %cst_10 = arith.constant 1.000000e+00 : f32
    %21 = vector.broadcast %cst_10 : f32 to vector<8x128xf32>
    %22 = arith.addf %21, %20 : vector<8x128xf32>
    %23 = arith.divf %21, %22 : vector<8x128xf32>
    %24 = vector.extract_strided_slice %11 {offsets = [0, 256], sizes = [8, 128], strides = [1, 1]} : vector<8x512xf32> to vector<8x128xf32>
    %25 = math.tanh %24 : vector<8x128xf32>
    %26 = vector.extract_strided_slice %11 {offsets = [0, 384], sizes = [8, 128], strides = [1, 1]} : vector<8x512xf32> to vector<8x128xf32>
    %27 = arith.negf %26 : vector<8x128xf32>
    %28 = math.exp %27 : vector<8x128xf32>
    %cst_11 = arith.constant 1.000000e+00 : f32
    %29 = vector.broadcast %cst_11 : f32 to vector<8x128xf32>
    %30 = arith.addf %29, %28 : vector<8x128xf32>
    %31 = arith.divf %29, %30 : vector<8x128xf32>
    %32 = arith.mulf %23, %4 : vector<8x128xf32>
    %33 = arith.mulf %17, %25 : vector<8x128xf32>
    %34 = arith.addf %32, %33 : vector<8x128xf32>
    %35 = math.tanh %34 : vector<8x128xf32>
    %36 = arith.mulf %31, %35 : vector<8x128xf32>
    %37 = arith.index_cast %c0_i32_4 : i32 to index
    %c0_12 = arith.constant 0 : index
    %c0_13 = arith.constant 0 : index
    %38 = vector.load %arg5[%37, %c0_12, %c0_13] : memref<8x8x128xf32, #tpu.memory_space<vmem>>, vector<1x8x128xf32>
    %39 = vector.shape_cast %38 : vector<1x8x128xf32> to vector<8x128xf32>
    %40 = vector.shape_cast %36 : vector<8x128xf32> to vector<1x8x128xf32>
    tpu.vector_store %arg5[%37, %c0_12, %c0_13], %40 {strides = array<i32>} : memref<8x8x128xf32, #tpu.memory_space<vmem>>, vector<1x8x128xf32>,
    %c1_i32 = arith.constant 1 : i32
    %41 = arith.index_cast %c1_i32 : i32 to index
    %c0_14 = arith.constant 0 : index
    %c0_15 = arith.constant 0 : index
    %42 = vector.load %arg1[%41, %c0_14, %c0_15] : memref<8x8x512xf32, #tpu.memory_space<vmem>>, vector<1x8x512xf32>
    %43 = vector.shape_cast %42 : vector<1x8x512xf32> to vector<8x512xf32>
    %44 = arith.truncf %36 : vector<8x128xf32> to vector<8x128xbf16>
    %c0_16 = arith.constant 0 : index
    %c0_17 = arith.constant 0 : index
    %45 = vector.load %arg4[%c0_16, %c0_17] : memref<128x512xbf16, #tpu.memory_space<vmem>>, vector<128x512xbf16>
    %cst_18 = arith.constant dense<0.000000e+00> : vector<8x512xf32>
    %46 = tpu.matmul %44, %45, %cst_18 {dimension_numbers = #tpu.dot_dimension_numbers<[1], [0], [0], [1], [0, 0, 1, 1], [], []>} : vector<8x128xbf16>, vector<128x512xbf16>, vector<8x512xf32> -> vector<8x512xf32>
    %47 = arith.addf %43, %46 : vector<8x512xf32>
    %48 = vector.extract_strided_slice %47 {offsets = [0, 0], sizes = [8, 128], strides = [1, 1]} : vector<8x512xf32> to vector<8x128xf32>
    %49 = arith.negf %48 : vector<8x128xf32>
    %50 = math.exp %49 : vector<8x128xf32>
    %cst_19 = arith.constant 1.000000e+00 : f32
    %51 = vector.broadcast %cst_19 : f32 to vector<8x128xf32>
    %52 = arith.addf %51, %50 : vector<8x128xf32>
    %53 = arith.divf %51, %52 : vector<8x128xf32>
    %54 = vector.extract_strided_slice %47 {offsets = [0, 128], sizes = [8, 128], strides = [1, 1]} : vector<8x512xf32> to vector<8x128xf32>
    %55 = arith.negf %54 : vector<8x128xf32>
    %56 = math.exp %55 : vector<8x128xf32>
    %cst_20 = arith.constant 1.000000e+00 : f32
    %57 = vector.broadcast %cst_20 : f32 to vector<8x128xf32>
    %58 = arith.addf %57, %56 : vector<8x128xf32>
    %59 = arith.divf %57, %58 : vector<8x128xf32>
    %60 = vector.extract_strided_slice %47 {offsets = [0, 256], sizes = [8, 128], strides = [1, 1]} : vector<8x512xf32> to vector<8x128xf32>
    %61 = math.tanh %60 : vector<8x128xf32>
    %62 = vector.extract_strided_slice %47 {offsets = [0, 384], sizes = [8, 128], strides = [1, 1]} : vector<8x512xf32> to vector<8x128xf32>
    %63 = arith.negf %62 : vector<8x128xf32>
    %64 = math.exp %63 : vector<8x128xf32>
    %cst_21 = arith.constant 1.000000e+00 : f32
    %65 = vector.broadcast %cst_21 : f32 to vector<8x128xf32>
    %66 = arith.addf %65, %64 : vector<8x128xf32>
    %67 = arith.divf %65, %66 : vector<8x128xf32>
    %68 = arith.mulf %59, %34 : vector<8x128xf32>
    %69 = arith.mulf %53, %61 : vector<8x128xf32>
    %70 = arith.addf %68, %69 : vector<8x128xf32>
    %71 = math.tanh %70 : vector<8x128xf32>
    %72 = arith.mulf %67, %71 : vector<8x128xf32>
    %73 = arith.index_cast %c1_i32 : i32 to index
    %c0_22 = arith.constant 0 : index
    %c0_23 = arith.constant 0 : index
    %74 = vector.load %arg5[%73, %c0_22, %c0_23] : memref<8x8x128xf32, #tpu.memory_space<vmem>>, vector<1x8x128xf32>
    %75 = vector.shape_cast %74 : vector<1x8x128xf32> to vector<8x128xf32>
    %76 = vector.shape_cast %72 : vector<8x128xf32> to vector<1x8x128xf32>
    tpu.vector_store %arg5[%73, %c0_22, %c0_23], %76 {strides = array<i32>} : memref<8x8x128xf32, #tpu.memory_space<vmem>>, vector<1x8x128xf32>,
    %c2_i32 = arith.constant 2 : i32
    %77 = arith.index_cast %c2_i32 : i32 to index
    %c0_24 = arith.constant 0 : index
    %c0_25 = arith.constant 0 : index
    %78 = vector.load %arg1[%77, %c0_24, %c0_25] : memref<8x8x512xf32, #tpu.memory_space<vmem>>, vector<1x8x512xf32>
    %79 = vector.shape_cast %78 : vector<1x8x512xf32> to vector<8x512xf32>
    %80 = arith.truncf %72 : vector<8x128xf32> to vector<8x128xbf16>
    %c0_26 = arith.constant 0 : index
    %c0_27 = arith.constant 0 : index
    %81 = vector.load %arg4[%c0_26, %c0_27] : memref<128x512xbf16, #tpu.memory_space<vmem>>, vector<128x512xbf16>
    %cst_28 = arith.constant dense<0.000000e+00> : vector<8x512xf32>
    %82 = tpu.matmul %80, %81, %cst_28 {dimension_numbers = #tpu.dot_dimension_numbers<[1], [0], [0], [1], [0, 0, 1, 1], [], []>} : vector<8x128xbf16>, vector<128x512xbf16>, vector<8x512xf32> -> vector<8x512xf32>
    %83 = arith.addf %79, %82 : vector<8x512xf32>
    %84 = vector.extract_strided_slice %83 {offsets = [0, 0], sizes = [8, 128], strides = [1, 1]} : vector<8x512xf32> to vector<8x128xf32>
    %85 = arith.negf %84 : vector<8x128xf32>
    %86 = math.exp %85 : vector<8x128xf32>
    %cst_29 = arith.constant 1.000000e+00 : f32
    %87 = vector.broadcast %cst_29 : f32 to vector<8x128xf32>
    %88 = arith.addf %87, %86 : vector<8x128xf32>
    %89 = arith.divf %87, %88 : vector<8x128xf32>
    %90 = vector.extract_strided_slice %83 {offsets = [0, 128], sizes = [8, 128], strides = [1, 1]} : vector<8x512xf32> to vector<8x128xf32>
    %91 = arith.negf %90 : vector<8x128xf32>
    %92 = math.exp %91 : vector<8x128xf32>
    %cst_30 = arith.constant 1.000000e+00 : f32
    %93 = vector.broadcast %cst_30 : f32 to vector<8x128xf32>
    %94 = arith.addf %93, %92 : vector<8x128xf32>
    %95 = arith.divf %93, %94 : vector<8x128xf32>
    %96 = vector.extract_strided_slice %83 {offsets = [0, 256], sizes = [8, 128], strides = [1, 1]} : vector<8x512xf32> to vector<8x128xf32>
    %97 = math.tanh %96 : vector<8x128xf32>
    %98 = vector.extract_strided_slice %83 {offsets = [0, 384], sizes = [8, 128], strides = [1, 1]} : vector<8x512xf32> to vector<8x128xf32>
    %99 = arith.negf %98 : vector<8x128xf32>
    %100 = math.exp %99 : vector<8x128xf32>
    %cst_31 = arith.constant 1.000000e+00 : f32
    %101 = vector.broadcast %cst_31 : f32 to vector<8x128xf32>
    %102 = arith.addf %101, %100 : vector<8x128xf32>
    %103 = arith.divf %101, %102 : vector<8x128xf32>
    %104 = arith.mulf %95, %70 : vector<8x128xf32>
    %105 = arith.mulf %89, %97 : vector<8x128xf32>
    %106 = arith.addf %104, %105 : vector<8x128xf32>
    %107 = math.tanh %106 : vector<8x128xf32>
    %108 = arith.mulf %103, %107 : vector<8x128xf32>
    %109 = arith.index_cast %c2_i32 : i32 to index
    %c0_32 = arith.constant 0 : index
    %c0_33 = arith.constant 0 : index
    %110 = vector.load %arg5[%109, %c0_32, %c0_33] : memref<8x8x128xf32, #tpu.memory_space<vmem>>, vector<1x8x128xf32>
    %111 = vector.shape_cast %110 : vector<1x8x128xf32> to vector<8x128xf32>
    %112 = vector.shape_cast %108 : vector<8x128xf32> to vector<1x8x128xf32>
    tpu.vector_store %arg5[%109, %c0_32, %c0_33], %112 {strides = array<i32>} : memref<8x8x128xf32, #tpu.memory_space<vmem>>, vector<1x8x128xf32>,
    %c3_i32 = arith.constant 3 : i32
    %113 = arith.index_cast %c3_i32 : i32 to index
    %c0_34 = arith.constant 0 : index
    %c0_35 = arith.constant 0 : index
    %114 = vector.load %arg1[%113, %c0_34, %c0_35] : memref<8x8x512xf32, #tpu.memory_space<vmem>>, vector<1x8x512xf32>
    %115 = vector.shape_cast %114 : vector<1x8x512xf32> to vector<8x512xf32>
    %116 = arith.truncf %108 : vector<8x128xf32> to vector<8x128xbf16>
    %c0_36 = arith.constant 0 : index
    %c0_37 = arith.constant 0 : index
    %117 = vector.load %arg4[%c0_36, %c0_37] : memref<128x512xbf16, #tpu.memory_space<vmem>>, vector<128x512xbf16>
    %cst_38 = arith.constant dense<0.000000e+00> : vector<8x512xf32>
    %118 = tpu.matmul %116, %117, %cst_38 {dimension_numbers = #tpu.dot_dimension_numbers<[1], [0], [0], [1], [0, 0, 1, 1], [], []>} : vector<8x128xbf16>, vector<128x512xbf16>, vector<8x512xf32> -> vector<8x512xf32>
    %119 = arith.addf %115, %118 : vector<8x512xf32>
    %120 = vector.extract_strided_slice %119 {offsets = [0, 0], sizes = [8, 128], strides = [1, 1]} : vector<8x512xf32> to vector<8x128xf32>
    %121 = arith.negf %120 : vector<8x128xf32>
    %122 = math.exp %121 : vector<8x128xf32>
    %cst_39 = arith.constant 1.000000e+00 : f32
    %123 = vector.broadcast %cst_39 : f32 to vector<8x128xf32>
    %124 = arith.addf %123, %122 : vector<8x128xf32>
    %125 = arith.divf %123, %124 : vector<8x128xf32>
    %126 = vector.extract_strided_slice %119 {offsets = [0, 128], sizes = [8, 128], strides = [1, 1]} : vector<8x512xf32> to vector<8x128xf32>
    %127 = arith.negf %126 : vector<8x128xf32>
    %128 = math.exp %127 : vector<8x128xf32>
    %cst_40 = arith.constant 1.000000e+00 : f32
    %129 = vector.broadcast %cst_40 : f32 to vector<8x128xf32>
    %130 = arith.addf %129, %128 : vector<8x128xf32>
    %131 = arith.divf %129, %130 : vector<8x128xf32>
    %132 = vector.extract_strided_slice %119 {offsets = [0, 256], sizes = [8, 128], strides = [1, 1]} : vector<8x512xf32> to vector<8x128xf32>
    %133 = math.tanh %132 : vector<8x128xf32>
    %134 = vector.extract_strided_slice %119 {offsets = [0, 384], sizes = [8, 128], strides = [1, 1]} : vector<8x512xf32> to vector<8x128xf32>
    %135 = arith.negf %134 : vector<8x128xf32>
    %136 = math.exp %135 : vector<8x128xf32>
    %cst_41 = arith.constant 1.000000e+00 : f32
    %137 = vector.broadcast %cst_41 : f32 to vector<8x128xf32>
    %138 = arith.addf %137, %136 : vector<8x128xf32>
    %139 = arith.divf %137, %138 : vector<8x128xf32>
    %140 = arith.mulf %131, %106 : vector<8x128xf32>
    %141 = arith.mulf %125, %133 : vector<8x128xf32>
    %142 = arith.addf %140, %141 : vector<8x128xf32>
    %143 = math.tanh %142 : vector<8x128xf32>
    %144 = arith.mulf %139, %143 : vector<8x128xf32>
    %145 = arith.index_cast %c3_i32 : i32 to index
    %c0_42 = arith.constant 0 : index
    %c0_43 = arith.constant 0 : index
    %146 = vector.load %arg5[%145, %c0_42, %c0_43] : memref<8x8x128xf32, #tpu.memory_space<vmem>>, vector<1x8x128xf32>
    %147 = vector.shape_cast %146 : vector<1x8x128xf32> to vector<8x128xf32>
    %148 = vector.shape_cast %144 : vector<8x128xf32> to vector<1x8x128xf32>
    tpu.vector_store %arg5[%145, %c0_42, %c0_43], %148 {strides = array<i32>} : memref<8x8x128xf32, #tpu.memory_space<vmem>>, vector<1x8x128xf32>,
    %c4_i32 = arith.constant 4 : i32
    %149 = arith.index_cast %c4_i32 : i32 to index
    %c0_44 = arith.constant 0 : index
    %c0_45 = arith.constant 0 : index
    %150 = vector.load %arg1[%149, %c0_44, %c0_45] : memref<8x8x512xf32, #tpu.memory_space<vmem>>, vector<1x8x512xf32>
    %151 = vector.shape_cast %150 : vector<1x8x512xf32> to vector<8x512xf32>
    %152 = arith.truncf %144 : vector<8x128xf32> to vector<8x128xbf16>
    %c0_46 = arith.constant 0 : index
    %c0_47 = arith.constant 0 : index
    %153 = vector.load %arg4[%c0_46, %c0_47] : memref<128x512xbf16, #tpu.memory_space<vmem>>, vector<128x512xbf16>
    %cst_48 = arith.constant dense<0.000000e+00> : vector<8x512xf32>
    %154 = tpu.matmul %152, %153, %cst_48 {dimension_numbers = #tpu.dot_dimension_numbers<[1], [0], [0], [1], [0, 0, 1, 1], [], []>} : vector<8x128xbf16>, vector<128x512xbf16>, vector<8x512xf32> -> vector<8x512xf32>
    %155 = arith.addf %151, %154 : vector<8x512xf32>
    %156 = vector.extract_strided_slice %155 {offsets = [0, 0], sizes = [8, 128], strides = [1, 1]} : vector<8x512xf32> to vector<8x128xf32>
    %157 = arith.negf %156 : vector<8x128xf32>
    %158 = math.exp %157 : vector<8x128xf32>
    %cst_49 = arith.constant 1.000000e+00 : f32
    %159 = vector.broadcast %cst_49 : f32 to vector<8x128xf32>
    %160 = arith.addf %159, %158 : vector<8x128xf32>
    %161 = arith.divf %159, %160 : vector<8x128xf32>
    %162 = vector.extract_strided_slice %155 {offsets = [0, 128], sizes = [8, 128], strides = [1, 1]} : vector<8x512xf32> to vector<8x128xf32>
    %163 = arith.negf %162 : vector<8x128xf32>
    %164 = math.exp %163 : vector<8x128xf32>
    %cst_50 = arith.constant 1.000000e+00 : f32
    %165 = vector.broadcast %cst_50 : f32 to vector<8x128xf32>
    %166 = arith.addf %165, %164 : vector<8x128xf32>
    %167 = arith.divf %165, %166 : vector<8x128xf32>
    %168 = vector.extract_strided_slice %155 {offsets = [0, 256], sizes = [8, 128], strides = [1, 1]} : vector<8x512xf32> to vector<8x128xf32>
    %169 = math.tanh %168 : vector<8x128xf32>
    %170 = vector.extract_strided_slice %155 {offsets = [0, 384], sizes = [8, 128], strides = [1, 1]} : vector<8x512xf32> to vector<8x128xf32>
    %171 = arith.negf %170 : vector<8x128xf32>
    %172 = math.exp %171 : vector<8x128xf32>
    %cst_51 = arith.constant 1.000000e+00 : f32
    %173 = vector.broadcast %cst_51 : f32 to vector<8x128xf32>
    %174 = arith.addf %173, %172 : vector<8x128xf32>
    %175 = arith.divf %173, %174 : vector<8x128xf32>
    %176 = arith.mulf %167, %142 : vector<8x128xf32>
    %177 = arith.mulf %161, %169 : vector<8x128xf32>
    %178 = arith.addf %176, %177 : vector<8x128xf32>
    %179 = math.tanh %178 : vector<8x128xf32>
    %180 = arith.mulf %175, %179 : vector<8x128xf32>
    %181 = arith.index_cast %c4_i32 : i32 to index
    %c0_52 = arith.constant 0 : index
    %c0_53 = arith.constant 0 : index
    %182 = vector.load %arg5[%181, %c0_52, %c0_53] : memref<8x8x128xf32, #tpu.memory_space<vmem>>, vector<1x8x128xf32>
    %183 = vector.shape_cast %182 : vector<1x8x128xf32> to vector<8x128xf32>
    %184 = vector.shape_cast %180 : vector<8x128xf32> to vector<1x8x128xf32>
    tpu.vector_store %arg5[%181, %c0_52, %c0_53], %184 {strides = array<i32>} : memref<8x8x128xf32, #tpu.memory_space<vmem>>, vector<1x8x128xf32>,
    %c5_i32 = arith.constant 5 : i32
    %185 = arith.index_cast %c5_i32 : i32 to index
    %c0_54 = arith.constant 0 : index
    %c0_55 = arith.constant 0 : index
    %186 = vector.load %arg1[%185, %c0_54, %c0_55] : memref<8x8x512xf32, #tpu.memory_space<vmem>>, vector<1x8x512xf32>
    %187 = vector.shape_cast %186 : vector<1x8x512xf32> to vector<8x512xf32>
    %188 = arith.truncf %180 : vector<8x128xf32> to vector<8x128xbf16>
    %c0_56 = arith.constant 0 : index
    %c0_57 = arith.constant 0 : index
    %189 = vector.load %arg4[%c0_56, %c0_57] : memref<128x512xbf16, #tpu.memory_space<vmem>>, vector<128x512xbf16>
    %cst_58 = arith.constant dense<0.000000e+00> : vector<8x512xf32>
    %190 = tpu.matmul %188, %189, %cst_58 {dimension_numbers = #tpu.dot_dimension_numbers<[1], [0], [0], [1], [0, 0, 1, 1], [], []>} : vector<8x128xbf16>, vector<128x512xbf16>, vector<8x512xf32> -> vector<8x512xf32>
    %191 = arith.addf %187, %190 : vector<8x512xf32>
    %192 = vector.extract_strided_slice %191 {offsets = [0, 0], sizes = [8, 128], strides = [1, 1]} : vector<8x512xf32> to vector<8x128xf32>
    %193 = arith.negf %192 : vector<8x128xf32>
    %194 = math.exp %193 : vector<8x128xf32>
    %cst_59 = arith.constant 1.000000e+00 : f32
    %195 = vector.broadcast %cst_59 : f32 to vector<8x128xf32>
    %196 = arith.addf %195, %194 : vector<8x128xf32>
    %197 = arith.divf %195, %196 : vector<8x128xf32>
    %198 = vector.extract_strided_slice %191 {offsets = [0, 128], sizes = [8, 128], strides = [1, 1]} : vector<8x512xf32> to vector<8x128xf32>
    %199 = arith.negf %198 : vector<8x128xf32>
    %200 = math.exp %199 : vector<8x128xf32>
    %cst_60 = arith.constant 1.000000e+00 : f32
    %201 = vector.broadcast %cst_60 : f32 to vector<8x128xf32>
    %202 = arith.addf %201, %200 : vector<8x128xf32>
    %203 = arith.divf %201, %202 : vector<8x128xf32>
    %204 = vector.extract_strided_slice %191 {offsets = [0, 256], sizes = [8, 128], strides = [1, 1]} : vector<8x512xf32> to vector<8x128xf32>
    %205 = math.tanh %204 : vector<8x128xf32>
    %206 = vector.extract_strided_slice %191 {offsets = [0, 384], sizes = [8, 128], strides = [1, 1]} : vector<8x512xf32> to vector<8x128xf32>
    %207 = arith.negf %206 : vector<8x128xf32>
    %208 = math.exp %207 : vector<8x128xf32>
    %cst_61 = arith.constant 1.000000e+00 : f32
    %209 = vector.broadcast %cst_61 : f32 to vector<8x128xf32>
    %210 = arith.addf %209, %208 : vector<8x128xf32>
    %211 = arith.divf %209, %210 : vector<8x128xf32>
    %212 = arith.mulf %203, %178 : vector<8x128xf32>
    %213 = arith.mulf %197, %205 : vector<8x128xf32>
    %214 = arith.addf %212, %213 : vector<8x128xf32>
    %215 = math.tanh %214 : vector<8x128xf32>
    %216 = arith.mulf %211, %215 : vector<8x128xf32>
    %217 = arith.index_cast %c5_i32 : i32 to index
    %c0_62 = arith.constant 0 : index
    %c0_63 = arith.constant 0 : index
    %218 = vector.load %arg5[%217, %c0_62, %c0_63] : memref<8x8x128xf32, #tpu.memory_space<vmem>>, vector<1x8x128xf32>
    %219 = vector.shape_cast %218 : vector<1x8x128xf32> to vector<8x128xf32>
    %220 = vector.shape_cast %216 : vector<8x128xf32> to vector<1x8x128xf32>
    tpu.vector_store %arg5[%217, %c0_62, %c0_63], %220 {strides = array<i32>} : memref<8x8x128xf32, #tpu.memory_space<vmem>>, vector<1x8x128xf32>,
    %c6_i32 = arith.constant 6 : i32
    %221 = arith.index_cast %c6_i32 : i32 to index
    %c0_64 = arith.constant 0 : index
    %c0_65 = arith.constant 0 : index
    %222 = vector.load %arg1[%221, %c0_64, %c0_65] : memref<8x8x512xf32, #tpu.memory_space<vmem>>, vector<1x8x512xf32>
    %223 = vector.shape_cast %222 : vector<1x8x512xf32> to vector<8x512xf32>
    %224 = arith.truncf %216 : vector<8x128xf32> to vector<8x128xbf16>
    %c0_66 = arith.constant 0 : index
    %c0_67 = arith.constant 0 : index
    %225 = vector.load %arg4[%c0_66, %c0_67] : memref<128x512xbf16, #tpu.memory_space<vmem>>, vector<128x512xbf16>
    %cst_68 = arith.constant dense<0.000000e+00> : vector<8x512xf32>
    %226 = tpu.matmul %224, %225, %cst_68 {dimension_numbers = #tpu.dot_dimension_numbers<[1], [0], [0], [1], [0, 0, 1, 1], [], []>} : vector<8x128xbf16>, vector<128x512xbf16>, vector<8x512xf32> -> vector<8x512xf32>
    %227 = arith.addf %223, %226 : vector<8x512xf32>
    %228 = vector.extract_strided_slice %227 {offsets = [0, 0], sizes = [8, 128], strides = [1, 1]} : vector<8x512xf32> to vector<8x128xf32>
    %229 = arith.negf %228 : vector<8x128xf32>
    %230 = math.exp %229 : vector<8x128xf32>
    %cst_69 = arith.constant 1.000000e+00 : f32
    %231 = vector.broadcast %cst_69 : f32 to vector<8x128xf32>
    %232 = arith.addf %231, %230 : vector<8x128xf32>
    %233 = arith.divf %231, %232 : vector<8x128xf32>
    %234 = vector.extract_strided_slice %227 {offsets = [0, 128], sizes = [8, 128], strides = [1, 1]} : vector<8x512xf32> to vector<8x128xf32>
    %235 = arith.negf %234 : vector<8x128xf32>
    %236 = math.exp %235 : vector<8x128xf32>
    %cst_70 = arith.constant 1.000000e+00 : f32
    %237 = vector.broadcast %cst_70 : f32 to vector<8x128xf32>
    %238 = arith.addf %237, %236 : vector<8x128xf32>
    %239 = arith.divf %237, %238 : vector<8x128xf32>
    %240 = vector.extract_strided_slice %227 {offsets = [0, 256], sizes = [8, 128], strides = [1, 1]} : vector<8x512xf32> to vector<8x128xf32>
    %241 = math.tanh %240 : vector<8x128xf32>
    %242 = vector.extract_strided_slice %227 {offsets = [0, 384], sizes = [8, 128], strides = [1, 1]} : vector<8x512xf32> to vector<8x128xf32>
    %243 = arith.negf %242 : vector<8x128xf32>
    %244 = math.exp %243 : vector<8x128xf32>
    %cst_71 = arith.constant 1.000000e+00 : f32
    %245 = vector.broadcast %cst_71 : f32 to vector<8x128xf32>
    %246 = arith.addf %245, %244 : vector<8x128xf32>
    %247 = arith.divf %245, %246 : vector<8x128xf32>
    %248 = arith.mulf %239, %214 : vector<8x128xf32>
    %249 = arith.mulf %233, %241 : vector<8x128xf32>
    %250 = arith.addf %248, %249 : vector<8x128xf32>
    %251 = math.tanh %250 : vector<8x128xf32>
    %252 = arith.mulf %247, %251 : vector<8x128xf32>
    %253 = arith.index_cast %c6_i32 : i32 to index
    %c0_72 = arith.constant 0 : index
    %c0_73 = arith.constant 0 : index
    %254 = vector.load %arg5[%253, %c0_72, %c0_73] : memref<8x8x128xf32, #tpu.memory_space<vmem>>, vector<1x8x128xf32>
    %255 = vector.shape_cast %254 : vector<1x8x128xf32> to vector<8x128xf32>
    %256 = vector.shape_cast %252 : vector<8x128xf32> to vector<1x8x128xf32>
    tpu.vector_store %arg5[%253, %c0_72, %c0_73], %256 {strides = array<i32>} : memref<8x8x128xf32, #tpu.memory_space<vmem>>, vector<1x8x128xf32>,
    %c7_i32 = arith.constant 7 : i32
    %257 = arith.index_cast %c7_i32 : i32 to index
    %c0_74 = arith.constant 0 : index
    %c0_75 = arith.constant 0 : index
    %258 = vector.load %arg1[%257, %c0_74, %c0_75] : memref<8x8x512xf32, #tpu.memory_space<vmem>>, vector<1x8x512xf32>
    %259 = vector.shape_cast %258 : vector<1x8x512xf32> to vector<8x512xf32>
    %260 = arith.truncf %252 : vector<8x128xf32> to vector<8x128xbf16>
    %c0_76 = arith.constant 0 : index
    %c0_77 = arith.constant 0 : index
    %261 = vector.load %arg4[%c0_76, %c0_77] : memref<128x512xbf16, #tpu.memory_space<vmem>>, vector<128x512xbf16>
    %cst_78 = arith.constant dense<0.000000e+00> : vector<8x512xf32>
    %262 = tpu.matmul %260, %261, %cst_78 {dimension_numbers = #tpu.dot_dimension_numbers<[1], [0], [0], [1], [0, 0, 1, 1], [], []>} : vector<8x128xbf16>, vector<128x512xbf16>, vector<8x512xf32> -> vector<8x512xf32>
    %263 = arith.addf %259, %262 : vector<8x512xf32>
    %264 = vector.extract_strided_slice %263 {offsets = [0, 0], sizes = [8, 128], strides = [1, 1]} : vector<8x512xf32> to vector<8x128xf32>
    %265 = arith.negf %264 : vector<8x128xf32>
    %266 = math.exp %265 : vector<8x128xf32>
    %cst_79 = arith.constant 1.000000e+00 : f32
    %267 = vector.broadcast %cst_79 : f32 to vector<8x128xf32>
    %268 = arith.addf %267, %266 : vector<8x128xf32>
    %269 = arith.divf %267, %268 : vector<8x128xf32>
    %270 = vector.extract_strided_slice %263 {offsets = [0, 128], sizes = [8, 128], strides = [1, 1]} : vector<8x512xf32> to vector<8x128xf32>
    %271 = arith.negf %270 : vector<8x128xf32>
    %272 = math.exp %271 : vector<8x128xf32>
    %cst_80 = arith.constant 1.000000e+00 : f32
    %273 = vector.broadcast %cst_80 : f32 to vector<8x128xf32>
    %274 = arith.addf %273, %272 : vector<8x128xf32>
    %275 = arith.divf %273, %274 : vector<8x128xf32>
    %276 = vector.extract_strided_slice %263 {offsets = [0, 256], sizes = [8, 128], strides = [1, 1]} : vector<8x512xf32> to vector<8x128xf32>
    %277 = math.tanh %276 : vector<8x128xf32>
    %278 = vector.extract_strided_slice %263 {offsets = [0, 384], sizes = [8, 128], strides = [1, 1]} : vector<8x512xf32> to vector<8x128xf32>
    %279 = arith.negf %278 : vector<8x128xf32>
    %280 = math.exp %279 : vector<8x128xf32>
    %cst_81 = arith.constant 1.000000e+00 : f32
    %281 = vector.broadcast %cst_81 : f32 to vector<8x128xf32>
    %282 = arith.addf %281, %280 : vector<8x128xf32>
    %283 = arith.divf %281, %282 : vector<8x128xf32>
    %284 = arith.mulf %275, %250 : vector<8x128xf32>
    %285 = arith.mulf %269, %277 : vector<8x128xf32>
    %286 = arith.addf %284, %285 : vector<8x128xf32>
    %287 = math.tanh %286 : vector<8x128xf32>
    %288 = arith.mulf %283, %287 : vector<8x128xf32>
    %289 = arith.index_cast %c7_i32 : i32 to index
    %c0_82 = arith.constant 0 : index
    %c0_83 = arith.constant 0 : index
    %290 = vector.load %arg5[%289, %c0_82, %c0_83] : memref<8x8x128xf32, #tpu.memory_space<vmem>>, vector<1x8x128xf32>
    %291 = vector.shape_cast %290 : vector<1x8x128xf32> to vector<8x128xf32>
    %292 = vector.shape_cast %288 : vector<8x128xf32> to vector<1x8x128xf32>
    tpu.vector_store %arg5[%289, %c0_82, %c0_83], %292 {strides = array<i32>} : memref<8x8x128xf32, #tpu.memory_space<vmem>>, vector<1x8x128xf32>,
    %c8_i32 = arith.constant 8 : i32
    %c0_84 = arith.constant 0 : index
    %c0_85 = arith.constant 0 : index
    %293 = vector.load %arg6[%c0_84, %c0_85] : memref<8x128xf32, #tpu.memory_space<vmem>>, vector<8x128xf32>
    tpu.vector_store %arg6[%c0_84, %c0_85], %288 {strides = array<i32>} : memref<8x128xf32, #tpu.memory_space<vmem>>, vector<8x128xf32>,
    %c0_86 = arith.constant 0 : index
    %c0_87 = arith.constant 0 : index
    %294 = vector.load %arg7[%c0_86, %c0_87] : memref<8x128xf32, #tpu.memory_space<vmem>>, vector<8x128xf32>
    tpu.vector_store %arg7[%c0_86, %c0_87], %286 {strides = array<i32>} : memref<8x128xf32, #tpu.memory_space<vmem>>, vector<8x128xf32>,
    return
  }
  func.func @transform_0(%arg0: i32) -> (i32, i32, i32) {
    %c0_i32 = arith.constant 0 : i32
    %c0_i32_0 = arith.constant 0 : i32
    %c0_i32_1 = arith.constant 0 : i32
    return %arg0, %c0_i32, %c0_i32_0 : i32, i32, i32
  }
  func.func @transform_1(%arg0: i32) -> (i32, i32) {
    %c0_i32 = arith.constant 0 : i32
    %c0_i32_0 = arith.constant 0 : i32
    %c0_i32_1 = arith.constant 0 : i32
    return %c0_i32, %c0_i32_0 : i32, i32
  }
  func.func @transform_2(%arg0: i32) -> (i32, i32) {
    %c0_i32 = arith.constant 0 : i32
    %c0_i32_0 = arith.constant 0 : i32
    %c0_i32_1 = arith.constant 0 : i32
    return %c0_i32, %c0_i32_0 : i32, i32
  }
  func.func @transform_3(%arg0: i32) -> (i32, i32) {
    %c0_i32 = arith.constant 0 : i32
    %c0_i32_0 = arith.constant 0 : i32
    %c0_i32_1 = arith.constant 0 : i32
    return %c0_i32, %c0_i32_0 : i32, i32
  }
  func.func @transform_4(%arg0: i32) -> (i32, i32, i32) {
    %c0_i32 = arith.constant 0 : i32
    %c0_i32_0 = arith.constant 0 : i32
    %c0_i32_1 = arith.constant 0 : i32
    return %arg0, %c0_i32, %c0_i32_0 : i32, i32, i32
  }
}

</mosaic_0001>

<llo_original>
// kernel: tpu_custom_call.1
$region0: #{tpu_custom_call.1}
  #allocation0 [shape = 'u32[]', space=smem, size = 0x4, offset = 0x4, fixed_abs, tag = 'smem constant byte address 0x4 - core index']
  #allocation1 [shape = 'u32[144,128]{1,0:T(1,128)}', space=vmem, size = 0x12000, scoped, tag = 'internal scratch']
  #allocation2 [shape = 'f32[8,128]{1,0:T(8,128)}', space=vmem, size = 0x1000, scoped, tag = 'scratch operand']
  #allocation3 [shape = 'f32[8,128]{1,0:T(8,128)}', space=vmem, size = 0x1000, scoped, tag = 'scratch operand']
  %s0 = inlined_call_operand.hbm [shape: f32[8,8,512], index: 0, kind: input, shape index: {}]
  %s1 = inlined_call_operand.hbm [shape: f32[8,128], index: 1, kind: input, shape index: {}]
  %s2 = inlined_call_operand.hbm [shape: f32[8,128], index: 2, kind: input, shape index: {}]
  %s3 = inlined_call_operand.hbm [shape: bf16[128,512], index: 3, kind: input, shape index: {}]
  %s4 = inlined_call_operand.hbm [shape: f32[8,8,128], index: 4, kind: output, shape index: {}]
  %s5 = sld [smem:[#allocation0]]
  $region46: #{tpu_custom_call.1} parent=0
    _
  %s7 = ssub.s32 1, %s5
  %s8 = scalar_select 0, %s7, %s5
  $region1: #{tpu_custom_call.1} parent=0
    #allocation4 [shape = 'u8[131072]{0}', space=vmem, size = 0x20000, scoped, tag = 'input window, operand 0, single buffered']
    #allocation5 [shape = 's32[1]{0}', space=sflag, size = 0x4, scoped, tag = 'scoped memory for tpu_custom_call.1']
    #allocation6 [shape = 's32[1]{0}', space=sflag, size = 0x4, scoped, tag = 'scoped memory for tpu_custom_call.1']
    #allocation7 [shape = 'u8[4096]{0}', space=vmem, size = 0x1000, scoped, tag = 'input window, operand 1, single buffered']
    #allocation8 [shape = 's32[1]{0}', space=sflag, size = 0x4, scoped, tag = 'scoped memory for tpu_custom_call.1']
    #allocation9 [shape = 'u8[4096]{0}', space=vmem, size = 0x1000, scoped, tag = 'input window, operand 2, single buffered']
    #allocation10 [shape = 'u8[131072]{0}', space=vmem, size = 0x20000, scoped, tag = 'input window, operand 3, single buffered']
    #allocation11 [shape = 's32[1]{0}', space=sflag, size = 0x4, scoped, tag = 'scoped memory for tpu_custom_call.1']
    #allocation12 [shape = 'u8[32768]{0}', space=vmem, size = 0x8000, scoped, tag = 'output window, operand 0, single buffered']
    %9 = vsyncpa [#allocation5], 0
    %10 = vsyncpa [#allocation8], 0
    %11 = vsyncpa [#allocation11], 0
    %12 = vsyncpa [#allocation6], 0
    // Predicated region
    $region2: #{tpu_custom_call.1} parent=1 // pred_check
      _
    $region3: #{tpu_custom_call.1} parent=1 // pred_check_branch
      %14 = sbr.rel (0) target = $region5
    $region4: #{tpu_custom_call.1} parent=1 // pred_region
      %s16 = ssub.s32 4096, 4096
      %17 = vsyncadd [#allocation5], %s16
      %s18 = sshll.u32 [#allocation4], 4
      %s19 = int_to_ptr.vmem [resolvable:$true] %s18
      %24 = dma.hbm_to_vmem [thread:$0]  %s0, 4096, %s19, [#allocation5], 512, 512, 32
    $region5: #{tpu_custom_call.1} parent=1 // pred_fallthru
      _
    // Predicated region
    $region6: #{tpu_custom_call.1} parent=1 // pred_check
      _
    $region7: #{tpu_custom_call.1} parent=1 // pred_check_branch
      %26 = sbr.rel (0) target = $region9
    $region8: #{tpu_custom_call.1} parent=1 // pred_region
      %s28 = ssub.s32 128, 128
      %29 = vsyncadd [#allocation8], %s28
      %s31 = sshll.u32 [#allocation7], 4
      %s32 = int_to_ptr.vmem [resolvable:$true] %s31
      %34 = dma.hbm_to_vmem [thread:$0]  %s1, 128, %s32, [#allocation8]
    $region9: #{tpu_custom_call.1} parent=1 // pred_fallthru
      _
    // Predicated region
    $region10: #{tpu_custom_call.1} parent=1 // pred_check
      _
    $region11: #{tpu_custom_call.1} parent=1 // pred_check_branch
      %36 = sbr.rel (0) target = $region13
    $region12: #{tpu_custom_call.1} parent=1 // pred_region
      %s38 = ssub.s32 128, 128
      %39 = vsyncadd [#allocation8], %s38
      %s41 = sshll.u32 [#allocation9], 4
      %s42 = int_to_ptr.vmem [resolvable:$true] %s41
      %44 = dma.hbm_to_vmem [thread:$0]  %s2, 128, %s42, [#allocation8]
    $region13: #{tpu_custom_call.1} parent=1 // pred_fallthru
      _
    // Predicated region
    $region14: #{tpu_custom_call.1} parent=1 // pred_check
      _
    $region15: #{tpu_custom_call.1} parent=1 // pred_check_branch
      %46 = sbr.rel (0) target = $region17
    $region16: #{tpu_custom_call.1} parent=1 // pred_region
      %s48 = ssub.s32 4096, 4096
      %49 = vsyncadd [#allocation11], %s48
      %s50 = sshll.u32 [#allocation10], 4
      %s51 = int_to_ptr.vmem [resolvable:$true] %s50
      %56 = dma.hbm_to_vmem [thread:$0]  %s3, 4096, %s51, [#allocation11], 256, 256, 16
    $region17: #{tpu_custom_call.1} parent=1 // pred_fallthru
      _
    // Predicated region
    $region18: #{tpu_custom_call.1} parent=1 // pred_check
      _
    $region19: #{tpu_custom_call.1} parent=1 // pred_check_branch
      %58 = sbr.rel (0) target = $region21
    $region20: #{tpu_custom_call.1} parent=1 // pred_region
      %59 = dma.done [#allocation5], 4096
    $region21: #{tpu_custom_call.1} parent=1 // pred_fallthru
      _
    // Predicated region
    $region22: #{tpu_custom_call.1} parent=1 // pred_check
      _
    $region23: #{tpu_custom_call.1} parent=1 // pred_check_branch
      %61 = sbr.rel (0) target = $region25
    $region24: #{tpu_custom_call.1} parent=1 // pred_region
      %62 = dma.done [#allocation8], 128
    $region25: #{tpu_custom_call.1} parent=1 // pred_fallthru
      _
    // Predicated region
    $region26: #{tpu_custom_call.1} parent=1 // pred_check
      _
    $region27: #{tpu_custom_call.1} parent=1 // pred_check_branch
      %64 = sbr.rel (0) target = $region29
    $region28: #{tpu_custom_call.1} parent=1 // pred_region
      %65 = dma.done [#allocation8], 128
    $region29: #{tpu_custom_call.1} parent=1 // pred_fallthru
      _
    // Predicated region
    $region30: #{tpu_custom_call.1} parent=1 // pred_check
      _
    $region31: #{tpu_custom_call.1} parent=1 // pred_check_branch
      %67 = sbr.rel (0) target = $region33
    $region32: #{tpu_custom_call.1} parent=1 // pred_region
      %68 = dma.done [#allocation11], 4096
    $region33: #{tpu_custom_call.1} parent=1 // pred_fallthru
      _
    %p70 = scmp.eq.s32.totalorder 0, 0
    // Predicated region
    $region34: #{tpu_custom_call.1} parent=1 // pred_check
      %p71 = pneg %p70
    $region35: #{tpu_custom_call.1} parent=1 // pred_check_branch
      %73 = sbr.rel (%p71) target = $region37
    $region36: #{tpu_custom_call.1} parent=1 // pred_region
      %v74 = vld [vmem:[#allocation7] sm:$0xff]
      %75 = vst [vmem:[#allocation2] sm:$0xff] %v74
      %v76 = vld [vmem:[#allocation9] sm:$0xff]
      %77 = vst [vmem:[#allocation3] sm:$0xff] %v76
    $region37: #{tpu_custom_call.1} parent=1 // pred_fallthru
      _
    %v78 = vld [vmem:[#allocation2] sm:$0xff]
    %v79 = vld [vmem:[#allocation3] sm:$0xff]
    %v80 = vld [vmem:[#allocation4] sm:$0xff]
    %v81 = vld [vmem:[#allocation4 + $0x8] sm:$0xff]
    %v82 = vld [vmem:[#allocation4 + $0x10] sm:$0xff]
    %v83 = vld [vmem:[#allocation4 + $0x18] sm:$0xff]
    %v84 = vpack.c.bf16 %v78, %v78
    %v85 = vld [vmem:[#allocation10] sm:$0xff]
    %v86 = vld [vmem:[#allocation10 + $0x8] sm:$0xff]
    %v87 = vld [vmem:[#allocation10 + $0x10] sm:$0xff]
    %v88 = vld [vmem:[#allocation10 + $0x18] sm:$0xff]
    %v89 = vld [vmem:[#allocation10 + $0x20] sm:$0xff]
    %v90 = vld [vmem:[#allocation10 + $0x28] sm:$0xff]
    %v91 = vld [vmem:[#allocation10 + $0x30] sm:$0xff]
    %v92 = vld [vmem:[#allocation10 + $0x38] sm:$0xff]
    %v93 = vld [vmem:[#allocation10 + $0x40] sm:$0xff]
    %v94 = vld [vmem:[#allocation10 + $0x48] sm:$0xff]
    %v95 = vld [vmem:[#allocation10 + $0x50] sm:$0xff]
    %v96 = vld [vmem:[#allocation10 + $0x58] sm:$0xff]
    %v97 = vld [vmem:[#allocation10 + $0x60] sm:$0xff]
    %v98 = vld [vmem:[#allocation10 + $0x68] sm:$0xff]
    %v99 = vld [vmem:[#allocation10 + $0x70] sm:$0xff]
    %v100 = vld [vmem:[#allocation10 + $0x78] sm:$0xff]
    %v101 = vld [vmem:[#allocation10 + $0x80] sm:$0xff]
    %v102 = vld [vmem:[#allocation10 + $0x88] sm:$0xff]
    %v103 = vld [vmem:[#allocation10 + $0x90] sm:$0xff]
    %v104 = vld [vmem:[#allocation10 + $0x98] sm:$0xff]
    %v105 = vld [vmem:[#allocation10 + $0xa0] sm:$0xff]
    %v106 = vld [vmem:[#allocation10 + $0xa8] sm:$0xff]
    %v107 = vld [vmem:[#allocation10 + $0xb0] sm:$0xff]
    %v108 = vld [vmem:[#allocation10 + $0xb8] sm:$0xff]
    %v109 = vld [vmem:[#allocation10 + $0xc0] sm:$0xff]
    %v110 = vld [vmem:[#allocation10 + $0xc8] sm:$0xff]
    %v111 = vld [vmem:[#allocation10 + $0xd0] sm:$0xff]
    %v112 = vld [vmem:[#allocation10 + $0xd8] sm:$0xff]
    %v113 = vld [vmem:[#allocation10 + $0xe0] sm:$0xff]
    %v114 = vld [vmem:[#allocation10 + $0xe8] sm:$0xff]
    %v115 = vld [vmem:[#allocation10 + $0xf0] sm:$0xff]
    %v116 = vld [vmem:[#allocation10 + $0xf8] sm:$0xff]
    %v149 = vunpack.c.l.b16 %v85
    %v150 = vunpack.c.h.b16 %v85
    %v151 = vunpack.c.l.b16 %v86
    %v152 = vunpack.c.h.b16 %v86
    %v153 = vunpack.c.l.b16 %v87
    %v154 = vunpack.c.h.b16 %v87
    %v155 = vunpack.c.l.b16 %v88
    %v156 = vunpack.c.h.b16 %v88
    %v157 = vunpack.c.l.b16 %v89
    %v158 = vunpack.c.h.b16 %v89
    %v159 = vunpack.c.l.b16 %v90
    %v160 = vunpack.c.h.b16 %v90
    %v161 = vunpack.c.l.b16 %v91
    %v162 = vunpack.c.h.b16 %v91
    %v163 = vunpack.c.l.b16 %v92
    %v164 = vunpack.c.h.b16 %v92
    %v165 = vunpack.c.l.b16 %v93
    %v166 = vunpack.c.h.b16 %v93
    %v167 = vunpack.c.l.b16 %v94
    %v168 = vunpack.c.h.b16 %v94
    %v169 = vunpack.c.l.b16 %v95
    %v170 = vunpack.c.h.b16 %v95
    %v171 = vunpack.c.l.b16 %v96
    %v172 = vunpack.c.h.b16 %v96
    %v173 = vunpack.c.l.b16 %v97
    %v174 = vunpack.c.h.b16 %v97
    %v175 = vunpack.c.l.b16 %v98
    %v176 = vunpack.c.h.b16 %v98
    %v177 = vunpack.c.l.b16 %v99
    %v178 = vunpack.c.h.b16 %v99
    %v179 = vunpack.c.l.b16 %v100
    %v180 = vunpack.c.h.b16 %v100
    %v181 = vunpack.c.l.b16 %v101
    %v182 = vunpack.c.h.b16 %v101
    %v183 = vunpack.c.l.b16 %v102
    %v184 = vunpack.c.h.b16 %v102
    %v185 = vunpack.c.l.b16 %v103
    %v186 = vunpack.c.h.b16 %v103
    %v187 = vunpack.c.l.b16 %v104
    %v188 = vunpack.c.h.b16 %v104
    %v189 = vunpack.c.l.b16 %v105
    %v190 = vunpack.c.h.b16 %v105
    %v191 = vunpack.c.l.b16 %v106
    %v192 = vunpack.c.h.b16 %v106
    %v193 = vunpack.c.l.b16 %v107
    %v194 = vunpack.c.h.b16 %v107
    %v195 = vunpack.c.l.b16 %v108
    %v196 = vunpack.c.h.b16 %v108
    %v197 = vunpack.c.l.b16 %v109
    %v198 = vunpack.c.h.b16 %v109
    %v199 = vunpack.c.l.b16 %v110
    %v200 = vunpack.c.h.b16 %v110
    %v201 = vunpack.c.l.b16 %v111
    %v202 = vunpack.c.h.b16 %v111
    %v203 = vunpack.c.l.b16 %v112
    %v204 = vunpack.c.h.b16 %v112
    %v205 = vunpack.c.l.b16 %v113
    %v206 = vunpack.c.h.b16 %v113
    %v207 = vunpack.c.l.b16 %v114
    %v208 = vunpack.c.h.b16 %v114
    %v209 = vunpack.c.l.b16 %v115
    %v210 = vunpack.c.h.b16 %v115
    %v211 = vunpack.c.l.b16 %v116
    %v212 = vunpack.c.h.b16 %v116
    %v213 = vpack.c.b16 %v153, %v149
    %v214 = vpack.c.b16 %v154, %v150
    %v215 = vpack.c.b16 %v155, %v151
    %v216 = vpack.c.b16 %v156, %v152
    %v217 = vpack.c.b16 %v161, %v157
    %v218 = vpack.c.b16 %v162, %v158
    %v219 = vpack.c.b16 %v163, %v159
    %v220 = vpack.c.b16 %v164, %v160
    %v221 = vpack.c.b16 %v169, %v165
    %v222 = vpack.c.b16 %v170, %v166
    %v223 = vpack.c.b16 %v171, %v167
    %v224 = vpack.c.b16 %v172, %v168
    %v225 = vpack.c.b16 %v177, %v173
    %v226 = vpack.c.b16 %v178, %v174
    %v227 = vpack.c.b16 %v179, %v175
    %v228 = vpack.c.b16 %v180, %v176
    %v229 = vpack.c.b16 %v185, %v181
    %v230 = vpack.c.b16 %v186, %v182
    %v231 = vpack.c.b16 %v187, %v183
    %v232 = vpack.c.b16 %v188, %v184
    %v233 = vpack.c.b16 %v193, %v189
    %v234 = vpack.c.b16 %v194, %v190
    %v235 = vpack.c.b16 %v195, %v191
    %v236 = vpack.c.b16 %v196, %v192
    %v237 = vpack.c.b16 %v201, %v197
    %v238 = vpack.c.b16 %v202, %v198
    %v239 = vpack.c.b16 %v203, %v199
    %v240 = vpack.c.b16 %v204, %v200
    %v241 = vpack.c.b16 %v209, %v205
    %v242 = vpack.c.b16 %v210, %v206
    %v243 = vpack.c.b16 %v211, %v207
    %v244 = vpack.c.b16 %v212, %v208
    %277 = vmatprep.subr.bf16.mxu0 %v242
    %278 = vmatpush1.bf16.msra.mxu0 %v241
    %279 = vmatprep.subr.bf16.mxu0 %v238
    %280 = vmatpush1.bf16.msra.mxu0 %v237
    %281 = vmatprep.subr.bf16.mxu0 %v234
    %282 = vmatpush1.bf16.msra.mxu0 %v233
    %283 = vmatprep.subr.bf16.mxu0 %v230
    %284 = vmatpush1.bf16.msra.mxu0 %v229
    %285 = vmatprep.subr.bf16.mxu0 %v226
    %286 = vmatpush1.bf16.msra.mxu0 %v225
    %287 = vmatprep.subr.bf16.mxu0 %v222
    %288 = vmatpush1.bf16.msra.mxu0 %v221
    %289 = vmatprep.subr.bf16.mxu0 %v218
    %290 = vmatpush1.bf16.msra.mxu0 %v217
    %291 = vmatprep.subr.bf16.mxu0 %v214
    %292 = vmatpush1.bf16.msra.mxu0 %v213
    %293 = vmatprep.subr.bf16.mxu0 0
    %294 = vmatpush2.bf16.msra.mxu0 0
    %295 = vmatprep.subr.bf16.mxu0 0
    %296 = vmatpush2.bf16.msra.mxu0 0
    %297 = vmatprep.subr.bf16.mxu0 0
    %298 = vmatpush2.bf16.msra.mxu0 0
    %299 = vmatprep.subr.bf16.mxu0 0
    %300 = vmatpush2.bf16.msra.mxu0 0
    %301 = vmatprep.subr.bf16.mxu0 0
    %302 = vmatpush2.bf16.msra.mxu0 0
    %303 = vmatprep.subr.bf16.mxu0 0
    %304 = vmatpush2.bf16.msra.mxu0 0
    %305 = vmatprep.subr.bf16.mxu0 0
    %306 = vmatpush2.bf16.msra.mxu0 0
    %307 = vmatprep.subr.bf16.mxu0 0
    %308 = vmatpush2.bf16.msra.mxu0 0
    %309 = vmatprep.mubr.bf16.mxu0 0
    %310 = vmatmul.mubr.bf16.gmra.mxu0 %v84
    %v311 = vpop.f32.mrf.mxu0
    %v312 = vadd.f32 0.0, %v311
    %v313 = vpop.f32.mrf.mxu0
    %v314 = vadd.f32 0.0, %v313
    %v315 = vpop.f32.mrf.mxu0
    %v316 = vpop.f32.mrf.mxu0
    %317 = vdwg.mxu0
    %318 = vmatprep.subr.bf16.mxu0 %v244
    %319 = vmatpush1.bf16.msra.mxu0 %v243
    %320 = vmatprep.subr.bf16.mxu0 %v240
    %321 = vmatpush1.bf16.msra.mxu0 %v239
    %322 = vmatprep.subr.bf16.mxu0 %v236
    %323 = vmatpush1.bf16.msra.mxu0 %v235
    %324 = vmatprep.subr.bf16.mxu0 %v232
    %325 = vmatpush1.bf16.msra.mxu0 %v231
    %326 = vmatprep.subr.bf16.mxu0 %v228
    %327 = vmatpush1.bf16.msra.mxu0 %v227
    %328 = vmatprep.subr.bf16.mxu0 %v224
    %329 = vmatpush1.bf16.msra.mxu0 %v223
    %330 = vmatprep.subr.bf16.mxu0 %v220
    %331 = vmatpush1.bf16.msra.mxu0 %v219
    %332 = vmatprep.subr.bf16.mxu0 %v216
    %333 = vmatpush1.bf16.msra.mxu0 %v215
    %334 = vmatprep.subr.bf16.mxu0 0
    %335 = vmatpush2.bf16.msra.mxu0 0
    %336 = vmatprep.subr.bf16.mxu0 0
    %337 = vmatpush2.bf16.msra.mxu0 0
    %338 = vmatprep.subr.bf16.mxu0 0
    %339 = vmatpush2.bf16.msra.mxu0 0
    %340 = vmatprep.subr.bf16.mxu0 0
    %341 = vmatpush2.bf16.msra.mxu0 0
    %342 = vmatprep.subr.bf16.mxu0 0
    %343 = vmatpush2.bf16.msra.mxu0 0
    %344 = vmatprep.subr.bf16.mxu0 0
    %345 = vmatpush2.bf16.msra.mxu0 0
    %346 = vmatprep.subr.bf16.mxu0 0
    %347 = vmatpush2.bf16.msra.mxu0 0
    %348 = vmatprep.subr.bf16.mxu0 0
    %349 = vmatpush2.bf16.msra.mxu0 0
    %350 = vmatprep.mubr.bf16.mxu0 0
    %351 = vmatmul.mubr.bf16.gmra.mxu0 %v84
    %v352 = vpop.f32.mrf.mxu0
    %v353 = vadd.f32 0.0, %v352
    %v354 = vpop.f32.mrf.mxu0
    %v355 = vadd.f32 0.0, %v354
    %v356 = vpop.f32.mrf.mxu0
    %v357 = vpop.f32.mrf.mxu0
    %358 = vdwg.mxu0
    %v359 = vadd.f32 %v80, %v312
    %v360 = vadd.f32 %v81, %v314
    %v361 = vadd.f32 %v82, %v353
    %v362 = vadd.f32 %v83, %v355
    %v363 = vxor.u32 %v359, 2147483648
    %v364 = vmul.f32 %v363, 1.442695
    %v365 = vpow.pop %v364
    %v366 = vadd.f32 %v365, 1.0
    %v367 = vrcp.pop %v366
    %v368 = vmul.f32 1.0, %v367
    %v369 = vxor.u32 %v360, 2147483648
    %v370 = vmul.f32 %v369, 1.442695
    %v371 = vpow.pop %v370
    %v372 = vadd.f32 %v371, 1.0
    %v373 = vrcp.pop %v372
    %v374 = vmul.f32 1.0, %v373
    %v375 = vtanh.pop %v361
    %v376 = vxor.u32 %v362, 2147483648
    %v377 = vmul.f32 %v376, 1.442695
    %v378 = vpow.pop %v377
    %v379 = vadd.f32 %v378, 1.0
    %v380 = vrcp.pop %v379
    %v381 = vmul.f32 1.0, %v380
    %v382 = vmul.f32 %v374, %v79
    %v383 = vmul.f32 %v368, %v375
    %v384 = vadd.f32 %v382, %v383
    %v385 = vtanh.pop %v384
    %v386 = vmul.f32 %v381, %v385
    %387 = vst [vmem:[#allocation12] sm:$0xff] %v386
    %s388 = scalar_lea.vmem [#allocation4], 32
    %v389 = vld [vmem:[%s388] sm:$0xff]
    %v390 = vld [vmem:[%s388 + $0x8] sm:$0xff]
    %v391 = vld [vmem:[%s388 + $0x10] sm:$0xff]
    %v392 = vld [vmem:[%s388 + $0x18] sm:$0xff]
    %v393 = vpack.c.bf16 %v386, %v386
    %v394 = vld [vmem:[#allocation10] sm:$0xff]
    %v395 = vld [vmem:[#allocation10 + $0x8] sm:$0xff]
    %v396 = vld [vmem:[#allocation10 + $0x10] sm:$0xff]
    %v397 = vld [vmem:[#allocation10 + $0x18] sm:$0xff]
    %v398 = vld [vmem:[#allocation10 + $0x20] sm:$0xff]
    %v399 = vld [vmem:[#allocation10 + $0x28] sm:$0xff]
    %v400 = vld [vmem:[#allocation10 + $0x30] sm:$0xff]
    %v401 = vld [vmem:[#allocation10 + $0x38] sm:$0xff]
    %v402 = vld [vmem:[#allocation10 + $0x40] sm:$0xff]
    %v403 = vld [vmem:[#allocation10 + $0x48] sm:$0xff]
    %v404 = vld [vmem:[#allocation10 + $0x50] sm:$0xff]
    %v405 = vld [vmem:[#allocation10 + $0x58] sm:$0xff]
    %v406 = vld [vmem:[#allocation10 + $0x60] sm:$0xff]
    %v407 = vld [vmem:[#allocation10 + $0x68] sm:$0xff]
    %v408 = vld [vmem:[#allocation10 + $0x70] sm:$0xff]
    %v409 = vld [vmem:[#allocation10 + $0x78] sm:$0xff]
    %v410 = vld [vmem:[#allocation10 + $0x80] sm:$0xff]
    %v411 = vld [vmem:[#allocation10 + $0x88] sm:$0xff]
    %v412 = vld [vmem:[#allocation10 + $0x90] sm:$0xff]
    %v413 = vld [vmem:[#allocation10 + $0x98] sm:$0xff]
    %v414 = vld [vmem:[#allocation10 + $0xa0] sm:$0xff]
    %v415 = vld [vmem:[#allocation10 + $0xa8] sm:$0xff]
    %v416 = vld [vmem:[#allocation10 + $0xb0] sm:$0xff]
    %v417 = vld [vmem:[#allocation10 + $0xb8] sm:$0xff]
    %v418 = vld [vmem:[#allocation10 + $0xc0] sm:$0xff]
    %v419 = vld [vmem:[#allocation10 + $0xc8] sm:$0xff]
    %v420 = vld [vmem:[#allocation10 + $0xd0] sm:$0xff]
    %v421 = vld [vmem:[#allocation10 + $0xd8] sm:$0xff]
    %v422 = vld [vmem:[#allocation10 + $0xe0] sm:$0xff]
    %v423 = vld [vmem:[#allocation10 + $0xe8] sm:$0xff]
    %v424 = vld [vmem:[#allocation10 + $0xf0] sm:$0xff]
    %v425 = vld [vmem:[#allocation10 + $0xf8] sm:$0xff]
    %v458 = vunpack.c.l.b16 %v394
    %v459 = vunpack.c.h.b16 %v394
    %v460 = vunpack.c.l.b16 %v395
    %v461 = vunpack.c.h.b16 %v395
    %v462 = vunpack.c.l.b16 %v396
    %v463 = vunpack.c.h.b16 %v396
    %v464 = vunpack.c.l.b16 %v397
    %v465 = vunpack.c.h.b16 %v397
    %v466 = vunpack.c.l.b16 %v398
    %v467 = vunpack.c.h.b16 %v398
    %v468 = vunpack.c.l.b16 %v399
    %v469 = vunpack.c.h.b16 %v399
    %v470 = vunpack.c.l.b16 %v400
    %v471 = vunpack.c.h.b16 %v400
    %v472 = vunpack.c.l.b16 %v401
    %v473 = vunpack.c.h.b16 %v401
    %v474 = vunpack.c.l.b16 %v402
    %v475 = vunpack.c.h.b16 %v402
    %v476 = vunpack.c.l.b16 %v403
    %v477 = vunpack.c.h.b16 %v403
    %v478 = vunpack.c.l.b16 %v404
    %v479 = vunpack.c.h.b16 %v404
    %v480 = vunpack.c.l.b16 %v405
    %v481 = vunpack.c.h.b16 %v405
    %v482 = vunpack.c.l.b16 %v406
    %v483 = vunpack.c.h.b16 %v406
    %v484 = vunpack.c.l.b16 %v407
    %v485 = vunpack.c.h.b16 %v407
    %v486 = vunpack.c.l.b16 %v408
    %v487 = vunpack.c.h.b16 %v408
    %v488 = vunpack.c.l.b16 %v409
    %v489 = vunpack.c.h.b16 %v409
    %v490 = vunpack.c.l.b16 %v410
    %v491 = vunpack.c.h.b16 %v410
    %v492 = vunpack.c.l.b16 %v411
    %v493 = vunpack.c.h.b16 %v411
    %v494 = vunpack.c.l.b16 %v412
    %v495 = vunpack.c.h.b16 %v412
    %v496 = vunpack.c.l.b16 %v413
    %v497 = vunpack.c.h.b16 %v413
    %v498 = vunpack.c.l.b16 %v414
    %v499 = vunpack.c.h.b16 %v414
    %v500 = vunpack.c.l.b16 %v415
    %v501 = vunpack.c.h.b16 %v415
    %v502 = vunpack.c.l.b16 %v416
    %v503 = vunpack.c.h.b16 %v416
    %v504 = vunpack.c.l.b16 %v417
    %v505 = vunpack.c.h.b16 %v417
    %v506 = vunpack.c.l.b16 %v418
    %v507 = vunpack.c.h.b16 %v418
    %v508 = vunpack.c.l.b16 %v419
    %v509 = vunpack.c.h.b16 %v419
    %v510 = vunpack.c.l.b16 %v420
    %v511 = vunpack.c.h.b16 %v420
    %v512 = vunpack.c.l.b16 %v421
    %v513 = vunpack.c.h.b16 %v421
    %v514 = vunpack.c.l.b16 %v422
    %v515 = vunpack.c.h.b16 %v422
    %v516 = vunpack.c.l.b16 %v423
    %v517 = vunpack.c.h.b16 %v423
    %v518 = vunpack.c.l.b16 %v424
    %v519 = vunpack.c.h.b16 %v424
    %v520 = vunpack.c.l.b16 %v425
    %v521 = vunpack.c.h.b16 %v425
    %v522 = vpack.c.b16 %v462, %v458
    %v523 = vpack.c.b16 %v463, %v459
    %v524 = vpack.c.b16 %v464, %v460
    %v525 = vpack.c.b16 %v465, %v461
    %v526 = vpack.c.b16 %v470, %v466
    %v527 = vpack.c.b16 %v471, %v467
    %v528 = vpack.c.b16 %v472, %v468
    %v529 = vpack.c.b16 %v473, %v469
    %v530 = vpack.c.b16 %v478, %v474
    %v531 = vpack.c.b16 %v479, %v475
    %v532 = vpack.c.b16 %v480, %v476
    %v533 = vpack.c.b16 %v481, %v477
    %v534 = vpack.c.b16 %v486, %v482
    %v535 = vpack.c.b16 %v487, %v483
    %v536 = vpack.c.b16 %v488, %v484
    %v537 = vpack.c.b16 %v489, %v485
    %v538 = vpack.c.b16 %v494, %v490
    %v539 = vpack.c.b16 %v495, %v491
    %v540 = vpack.c.b16 %v496, %v492
    %v541 = vpack.c.b16 %v497, %v493
    %v542 = vpack.c.b16 %v502, %v498
    %v543 = vpack.c.b16 %v503, %v499
    %v544 = vpack.c.b16 %v504, %v500
    %v545 = vpack.c.b16 %v505, %v501
    %v546 = vpack.c.b16 %v510, %v506
    %v547 = vpack.c.b16 %v511, %v507
    %v548 = vpack.c.b16 %v512, %v508
    %v549 = vpack.c.b16 %v513, %v509
    %v550 = vpack.c.b16 %v518, %v514
    %v551 = vpack.c.b16 %v519, %v515
    %v552 = vpack.c.b16 %v520, %v516
    %v553 = vpack.c.b16 %v521, %v517
    %586 = vmatprep.subr.bf16.mxu0 %v551
    %587 = vmatpush1.bf16.msra.mxu0 %v550
    %588 = vmatprep.subr.bf16.mxu0 %v547
    %589 = vmatpush1.bf16.msra.mxu0 %v546
    %590 = vmatprep.subr.bf16.mxu0 %v543
    %591 = vmatpush1.bf16.msra.mxu0 %v542
    %592 = vmatprep.subr.bf16.mxu0 %v539
    %593 = vmatpush1.bf16.msra.mxu0 %v538
    %594 = vmatprep.subr.bf16.mxu0 %v535
    %595 = vmatpush1.bf16.msra.mxu0 %v534
    %596 = vmatprep.subr.bf16.mxu0 %v531
    %597 = vmatpush1.bf16.msra.mxu0 %v530
    %598 = vmatprep.subr.bf16.mxu0 %v527
    %599 = vmatpush1.bf16.msra.mxu0 %v526
    %600 = vmatprep.subr.bf16.mxu0 %v523
    %601 = vmatpush1.bf16.msra.mxu0 %v522
    %602 = vmatprep.subr.bf16.mxu0 0
    %603 = vmatpush2.bf16.msra.mxu0 0
    %604 = vmatprep.subr.bf16.mxu0 0
    %605 = vmatpush2.bf16.msra.mxu0 0
    %606 = vmatprep.subr.bf16.mxu0 0
    %607 = vmatpush2.bf16.msra.mxu0 0
    %608 = vmatprep.subr.bf16.mxu0 0
    %609 = vmatpush2.bf16.msra.mxu0 0
    %610 = vmatprep.subr.bf16.mxu0 0
    %611 = vmatpush2.bf16.msra.mxu0 0
    %612 = vmatprep.subr.bf16.mxu0 0
    %613 = vmatpush2.bf16.msra.mxu0 0
    %614 = vmatprep.subr.bf16.mxu0 0
    %615 = vmatpush2.bf16.msra.mxu0 0
    %616 = vmatprep.subr.bf16.mxu0 0
    %617 = vmatpush2.bf16.msra.mxu0 0
    %618 = vmatprep.mubr.bf16.mxu0 0
    %619 = vmatmul.mubr.bf16.gmra.mxu0 %v393
    %v620 = vpop.f32.mrf.mxu0
    %v621 = vadd.f32 0.0, %v620
    %v622 = vpop.f32.mrf.mxu0
    %v623 = vadd.f32 0.0, %v622
    %v624 = vpop.f32.mrf.mxu0
    %v625 = vpop.f32.mrf.mxu0
    %626 = vdwg.mxu0
    %627 = vmatprep.subr.bf16.mxu0 %v553
    %628 = vmatpush1.bf16.msra.mxu0 %v552
    %629 = vmatprep.subr.bf16.mxu0 %v549
    %630 = vmatpush1.bf16.msra.mxu0 %v548
    %631 = vmatprep.subr.bf16.mxu0 %v545
    %632 = vmatpush1.bf16.msra.mxu0 %v544
    %633 = vmatprep.subr.bf16.mxu0 %v541
    %634 = vmatpush1.bf16.msra.mxu0 %v540
    %635 = vmatprep.subr.bf16.mxu0 %v537
    %636 = vmatpush1.bf16.msra.mxu0 %v536
    %637 = vmatprep.subr.bf16.mxu0 %v533
    %638 = vmatpush1.bf16.msra.mxu0 %v532
    %639 = vmatprep.subr.bf16.mxu0 %v529
    %640 = vmatpush1.bf16.msra.mxu0 %v528
    %641 = vmatprep.subr.bf16.mxu0 %v525
    %642 = vmatpush1.bf16.msra.mxu0 %v524
    %643 = vmatprep.subr.bf16.mxu0 0
    %644 = vmatpush2.bf16.msra.mxu0 0
    %645 = vmatprep.subr.bf16.mxu0 0
    %646 = vmatpush2.bf16.msra.mxu0 0
    %647 = vmatprep.subr.bf16.mxu0 0
    %648 = vmatpush2.bf16.msra.mxu0 0
    %649 = vmatprep.subr.bf16.mxu0 0
    %650 = vmatpush2.bf16.msra.mxu0 0
    %651 = vmatprep.subr.bf16.mxu0 0
    %652 = vmatpush2.bf16.msra.mxu0 0
    %653 = vmatprep.subr.bf16.mxu0 0
    %654 = vmatpush2.bf16.msra.mxu0 0
    %655 = vmatprep.subr.bf16.mxu0 0
    %656 = vmatpush2.bf16.msra.mxu0 0
    %657 = vmatprep.subr.bf16.mxu0 0
    %658 = vmatpush2.bf16.msra.mxu0 0
    %659 = vmatprep.mubr.bf16.mxu0 0
    %660 = vmatmul.mubr.bf16.gmra.mxu0 %v393
    %v661 = vpop.f32.mrf.mxu0
    %v662 = vadd.f32 0.0, %v661
    %v663 = vpop.f32.mrf.mxu0
    %v664 = vadd.f32 0.0, %v663
    %v665 = vpop.f32.mrf.mxu0
    %v666 = vpop.f32.mrf.mxu0
    %667 = vdwg.mxu0
    %v668 = vadd.f32 %v389, %v621
    %v669 = vadd.f32 %v390, %v623
    %v670 = vadd.f32 %v391, %v662
    %v671 = vadd.f32 %v392, %v664
    %v672 = vxor.u32 %v668, 2147483648
    %v673 = vmul.f32 %v672, 1.442695
    %v674 = vpow.pop %v673
    %v675 = vadd.f32 %v674, 1.0
    %v676 = vrcp.pop %v675
    %v677 = vmul.f32 1.0, %v676
    %v678 = vxor.u32 %v669, 2147483648
    %v679 = vmul.f32 %v678, 1.442695
    %v680 = vpow.pop %v679
    %v681 = vadd.f32 %v680, 1.0
    %v682 = vrcp.pop %v681
    %v683 = vmul.f32 1.0, %v682
    %v684 = vtanh.pop %v670
    %v685 = vxor.u32 %v671, 2147483648
    %v686 = vmul.f32 %v685, 1.442695
    %v687 = vpow.pop %v686
    %v688 = vadd.f32 %v687, 1.0
    %v689 = vrcp.pop %v688
    %v690 = vmul.f32 1.0, %v689
    %v691 = vmul.f32 %v683, %v384
    %v692 = vmul.f32 %v677, %v684
    %v693 = vadd.f32 %v691, %v692
    %v694 = vtanh.pop %v693
    %v695 = vmul.f32 %v690, %v694
    %s696 = scalar_lea.vmem [#allocation12], 8
    %697 = vst [vmem:[%s696] sm:$0xff] %v695
    %s698 = scalar_lea.vmem [#allocation4], 64
    %v699 = vld [vmem:[%s698] sm:$0xff]
    %v700 = vld [vmem:[%s698 + $0x8] sm:$0xff]
    %v701 = vld [vmem:[%s698 + $0x10] sm:$0xff]
    %v702 = vld [vmem:[%s698 + $0x18] sm:$0xff]
    %v703 = vpack.c.bf16 %v695, %v695
    %v704 = vld [vmem:[#allocation10] sm:$0xff]
    %v705 = vld [vmem:[#allocation10 + $0x8] sm:$0xff]
    %v706 = vld [vmem:[#allocation10 + $0x10] sm:$0xff]
    %v707 = vld [vmem:[#allocation10 + $0x18] sm:$0xff]
    %v708 = vld [vmem:[#allocation10 + $0x20] sm:$0xff]
    %v709 = vld [vmem:[#allocation10 + $0x28] sm:$0xff]
    %v710 = vld [vmem:[#allocation10 + $0x30] sm:$0xff]
    %v711 = vld [vmem:[#allocation10 + $0x38] sm:$0xff]
    %v712 = vld [vmem:[#allocation10 + $0x40] sm:$0xff]
    %v713 = vld [vmem:[#allocation10 + $0x48] sm:$0xff]
    %v714 = vld [vmem:[#allocation10 + $0x50] sm:$0xff]
    %v715 = vld [vmem:[#allocation10 + $0x58] sm:$0xff]
    %v716 = vld [vmem:[#allocation10 + $0x60] sm:$0xff]
    %v717 = vld [vmem:[#allocation10 + $0x68] sm:$0xff]
    %v718 = vld [vmem:[#allocation10 + $0x70] sm:$0xff]
    %v719 = vld [vmem:[#allocation10 + $0x78] sm:$0xff]
    %v720 = vld [vmem:[#allocation10 + $0x80] sm:$0xff]
    %v721 = vld [vmem:[#allocation10 + $0x88] sm:$0xff]
    %v722 = vld [vmem:[#allocation10 + $0x90] sm:$0xff]
    %v723 = vld [vmem:[#allocation10 + $0x98] sm:$0xff]
    %v724 = vld [vmem:[#allocation10 + $0xa0] sm:$0xff]
    %v725 = vld [vmem:[#allocation10 + $0xa8] sm:$0xff]
    %v726 = vld [vmem:[#allocation10 + $0xb0] sm:$0xff]
    %v727 = vld [vmem:[#allocation10 + $0xb8] sm:$0xff]
    %v728 = vld [vmem:[#allocation10 + $0xc0] sm:$0xff]
    %v729 = vld [vmem:[#allocation10 + $0xc8] sm:$0xff]
    %v730 = vld [vmem:[#allocation10 + $0xd0] sm:$0xff]
    %v731 = vld [vmem:[#allocation10 + $0xd8] sm:$0xff]
    %v732 = vld [vmem:[#allocation10 + $0xe0] sm:$0xff]
    %v733 = vld [vmem:[#allocation10 + $0xe8] sm:$0xff]
    %v734 = vld [vmem:[#allocation10 + $0xf0] sm:$0xff]
    %v735 = vld [vmem:[#allocation10 + $0xf8] sm:$0xff]
    %v768 = vunpack.c.l.b16 %v704
    %v769 = vunpack.c.h.b16 %v704
    %v770 = vunpack.c.l.b16 %v705
    %v771 = vunpack.c.h.b16 %v705
    %v772 = vunpack.c.l.b16 %v706
    %v773 = vunpack.c.h.b16 %v706
    %v774 = vunpack.c.l.b16 %v707
    %v775 = vunpack.c.h.b16 %v707
    %v776 = vunpack.c.l.b16 %v708
    %v777 = vunpack.c.h.b16 %v708
    %v778 = vunpack.c.l.b16 %v709
    %v779 = vunpack.c.h.b16 %v709
    %v780 = vunpack.c.l.b16 %v710
    %v781 = vunpack.c.h.b16 %v710
    %v782 = vunpack.c.l.b16 %v711
    %v783 = vunpack.c.h.b16 %v711
    %v784 = vunpack.c.l.b16 %v712
    %v785 = vunpack.c.h.b16 %v712
    %v786 = vunpack.c.l.b16 %v713
    %v787 = vunpack.c.h.b16 %v713
    %v788 = vunpack.c.l.b16 %v714
    %v789 = vunpack.c.h.b16 %v714
    %v790 = vunpack.c.l.b16 %v715
    %v791 = vunpack.c.h.b16 %v715
    %v792 = vunpack.c.l.b16 %v716
    %v793 = vunpack.c.h.b16 %v716
    %v794 = vunpack.c.l.b16 %v717
    %v795 = vunpack.c.h.b16 %v717
    %v796 = vunpack.c.l.b16 %v718
    %v797 = vunpack.c.h.b16 %v718
    %v798 = vunpack.c.l.b16 %v719
    %v799 = vunpack.c.h.b16 %v719
    %v800 = vunpack.c.l.b16 %v720
    %v801 = vunpack.c.h.b16 %v720
    %v802 = vunpack.c.l.b16 %v721
    %v803 = vunpack.c.h.b16 %v721
    %v804 = vunpack.c.l.b16 %v722
    %v805 = vunpack.c.h.b16 %v722
    %v806 = vunpack.c.l.b16 %v723
    %v807 = vunpack.c.h.b16 %v723
    %v808 = vunpack.c.l.b16 %v724
    %v809 = vunpack.c.h.b16 %v724
    %v810 = vunpack.c.l.b16 %v725
    %v811 = vunpack.c.h.b16 %v725
    %v812 = vunpack.c.l.b16 %v726
    %v813 = vunpack.c.h.b16 %v726
    %v814 = vunpack.c.l.b16 %v727
    %v815 = vunpack.c.h.b16 %v727
    %v816 = vunpack.c.l.b16 %v728
    %v817 = vunpack.c.h.b16 %v728
    %v818 = vunpack.c.l.b16 %v729
    %v819 = vunpack.c.h.b16 %v729
    %v820 = vunpack.c.l.b16 %v730
    %v821 = vunpack.c.h.b16 %v730
    %v822 = vunpack.c.l.b16 %v731
    %v823 = vunpack.c.h.b16 %v731
    %v824 = vunpack.c.l.b16 %v732
    %v825 = vunpack.c.h.b16 %v732
    %v826 = vunpack.c.l.b16 %v733
    %v827 = vunpack.c.h.b16 %v733
    %v828 = vunpack.c.l.b16 %v734
    %v829 = vunpack.c.h.b16 %v734
    %v830 = vunpack.c.l.b16 %v735
    %v831 = vunpack.c.h.b16 %v735
    %v832 = vpack.c.b16 %v772, %v768
    %v833 = vpack.c.b16 %v773, %v769
    %v834 = vpack.c.b16 %v774, %v770
    %v835 = vpack.c.b16 %v775, %v771
    %v836 = vpack.c.b16 %v780, %v776
    %v837 = vpack.c.b16 %v781, %v777
    %v838 = vpack.c.b16 %v782, %v778
    %v839 = vpack.c.b16 %v783, %v779
    %v840 = vpack.c.b16 %v788, %v784
    %v841 = vpack.c.b16 %v789, %v785
    %v842 = vpack.c.b16 %v790, %v786
    %v843 = vpack.c.b16 %v791, %v787
    %v844 = vpack.c.b16 %v796, %v792
    %v845 = vpack.c.b16 %v797, %v793
    %v846 = vpack.c.b16 %v798, %v794
    %v847 = vpack.c.b16 %v799, %v795
    %v848 = vpack.c.b16 %v804, %v800
    %v849 = vpack.c.b16 %v805, %v801
    %v850 = vpack.c.b16 %v806, %v802
    %v851 = vpack.c.b16 %v807, %v803
    %v852 = vpack.c.b16 %v812, %v808
    %v853 = vpack.c.b16 %v813, %v809
    %v854 = vpack.c.b16 %v814, %v810
    %v855 = vpack.c.b16 %v815, %v811
    %v856 = vpack.c.b16 %v820, %v816
    %v857 = vpack.c.b16 %v821, %v817
    %v858 = vpack.c.b16 %v822, %v818
    %v859 = vpack.c.b16 %v823, %v819
    %v860 = vpack.c.b16 %v828, %v824
    %v861 = vpack.c.b16 %v829, %v825
    %v862 = vpack.c.b16 %v830, %v826
    %v863 = vpack.c.b16 %v831, %v827
    %896 = vmatprep.subr.bf16.mxu0 %v861
    %897 = vmatpush1.bf16.msra.mxu0 %v860
    %898 = vmatprep.subr.bf16.mxu0 %v857
    %899 = vmatpush1.bf16.msra.mxu0 %v856
    %900 = vmatprep.subr.bf16.mxu0 %v853
    %901 = vmatpush1.bf16.msra.mxu0 %v852
    %902 = vmatprep.subr.bf16.mxu0 %v849
    %903 = vmatpush1.bf16.msra.mxu0 %v848
    %904 = vmatprep.subr.bf16.mxu0 %v845
    %905 = vmatpush1.bf16.msra.mxu0 %v844
    %906 = vmatprep.subr.bf16.mxu0 %v841
    %907 = vmatpush1.bf16.msra.mxu0 %v840
    %908 = vmatprep.subr.bf16.mxu0 %v837
    %909 = vmatpush1.bf16.msra.mxu0 %v836
    %910 = vmatprep.subr.bf16.mxu0 %v833
    %911 = vmatpush1.bf16.msra.mxu0 %v832
    %912 = vmatprep.subr.bf16.mxu0 0
    %913 = vmatpush2.bf16.msra.mxu0 0
    %914 = vmatprep.subr.bf16.mxu0 0
    %915 = vmatpush2.bf16.msra.mxu0 0
    %916 = vmatprep.subr.bf16.mxu0 0
    %917 = vmatpush2.bf16.msra.mxu0 0
    %918 = vmatprep.subr.bf16.mxu0 0
    %919 = vmatpush2.bf16.msra.mxu0 0
    %920 = vmatprep.subr.bf16.mxu0 0
    %921 = vmatpush2.bf16.msra.mxu0 0
    %922 = vmatprep.subr.bf16.mxu0 0
    %923 = vmatpush2.bf16.msra.mxu0 0
    %924 = vmatprep.subr.bf16.mxu0 0
    %925 = vmatpush2.bf16.msra.mxu0 0
    %926 = vmatprep.subr.bf16.mxu0 0
    %927 = vmatpush2.bf16.msra.mxu0 0
    %928 = vmatprep.mubr.bf16.mxu0 0
    %929 = vmatmul.mubr.bf16.gmra.mxu0 %v703
    %v930 = vpop.f32.mrf.mxu0
    %v931 = vadd.f32 0.0, %v930
    %v932 = vpop.f32.mrf.mxu0
    %v933 = vadd.f32 0.0, %v932
    %v934 = vpop.f32.mrf.mxu0
    %v935 = vpop.f32.mrf.mxu0
    %936 = vdwg.mxu0
    %937 = vmatprep.subr.bf16.mxu0 %v863
    %938 = vmatpush1.bf16.msra.mxu0 %v862
    %939 = vmatprep.subr.bf16.mxu0 %v859
    %940 = vmatpush1.bf16.msra.mxu0 %v858
    %941 = vmatprep.subr.bf16.mxu0 %v855
    %942 = vmatpush1.bf16.msra.mxu0 %v854
    %943 = vmatprep.subr.bf16.mxu0 %v851
    %944 = vmatpush1.bf16.msra.mxu0 %v850
    %945 = vmatprep.subr.bf16.mxu0 %v847
    %946 = vmatpush1.bf16.msra.mxu0 %v846
    %947 = vmatprep.subr.bf16.mxu0 %v843
    %948 = vmatpush1.bf16.msra.mxu0 %v842
    %949 = vmatprep.subr.bf16.mxu0 %v839
    %950 = vmatpush1.bf16.msra.mxu0 %v838
    %951 = vmatprep.subr.bf16.mxu0 %v835
    %952 = vmatpush1.bf16.msra.mxu0 %v834
    %953 = vmatprep.subr.bf16.mxu0 0
    %954 = vmatpush2.bf16.msra.mxu0 0
    %955 = vmatprep.subr.bf16.mxu0 0
    %956 = vmatpush2.bf16.msra.mxu0 0
    %957 = vmatprep.subr.bf16.mxu0 0
    %958 = vmatpush2.bf16.msra.mxu0 0
    %959 = vmatprep.subr.bf16.mxu0 0
    %960 = vmatpush2.bf16.msra.mxu0 0
    %961 = vmatprep.subr.bf16.mxu0 0
    %962 = vmatpush2.bf16.msra.mxu0 0
    %963 = vmatprep.subr.bf16.mxu0 0
    %964 = vmatpush2.bf16.msra.mxu0 0
    %965 = vmatprep.subr.bf16.mxu0 0
    %966 = vmatpush2.bf16.msra.mxu0 0
    %967 = vmatprep.subr.bf16.mxu0 0
    %968 = vmatpush2.bf16.msra.mxu0 0
    %969 = vmatprep.mubr.bf16.mxu0 0
    %970 = vmatmul.mubr.bf16.gmra.mxu0 %v703
    %v971 = vpop.f32.mrf.mxu0
    %v972 = vadd.f32 0.0, %v971
    %v973 = vpop.f32.mrf.mxu0
    %v974 = vadd.f32 0.0, %v973
    %v975 = vpop.f32.mrf.mxu0
    %v976 = vpop.f32.mrf.mxu0
    %977 = vdwg.mxu0
    %v978 = vadd.f32 %v699, %v931
    %v979 = vadd.f32 %v700, %v933
    %v980 = vadd.f32 %v701, %v972
    %v981 = vadd.f32 %v702, %v974
    %v982 = vxor.u32 %v978, 2147483648
    %v983 = vmul.f32 %v982, 1.442695
    %v984 = vpow.pop %v983
    %v985 = vadd.f32 %v984, 1.0
    %v986 = vrcp.pop %v985
    %v987 = vmul.f32 1.0, %v986
    %v988 = vxor.u32 %v979, 2147483648
    %v989 = vmul.f32 %v988, 1.442695
    %v990 = vpow.pop %v989
    %v991 = vadd.f32 %v990, 1.0
    %v992 = vrcp.pop %v991
    %v993 = vmul.f32 1.0, %v992
    %v994 = vtanh.pop %v980
    %v995 = vxor.u32 %v981, 2147483648
    %v996 = vmul.f32 %v995, 1.442695
    %v997 = vpow.pop %v996
    %v998 = vadd.f32 %v997, 1.0
    %v999 = vrcp.pop %v998
    %v1000 = vmul.f32 1.0, %v999
    %v1001 = vmul.f32 %v993, %v693
    %v1002 = vmul.f32 %v987, %v994
    %v1003 = vadd.f32 %v1001, %v1002
    %v1004 = vtanh.pop %v1003
    %v1005 = vmul.f32 %v1000, %v1004
    %s1006 = scalar_lea.vmem [#allocation12], 16
    %1007 = vst [vmem:[%s1006] sm:$0xff] %v1005
    %s1008 = scalar_lea.vmem [#allocation4], 96
    %v1009 = vld [vmem:[%s1008] sm:$0xff]
    %v1010 = vld [vmem:[%s1008 + $0x8] sm:$0xff]
    %v1011 = vld [vmem:[%s1008 + $0x10] sm:$0xff]
    %v1012 = vld [vmem:[%s1008 + $0x18] sm:$0xff]
    %v1013 = vpack.c.bf16 %v1005, %v1005
    %v1014 = vld [vmem:[#allocation10] sm:$0xff]
    %v1015 = vld [vmem:[#allocation10 + $0x8] sm:$0xff]
    %v1016 = vld [vmem:[#allocation10 + $0x10] sm:$0xff]
    %v1017 = vld [vmem:[#allocation10 + $0x18] sm:$0xff]
    %v1018 = vld [vmem:[#allocation10 + $0x20] sm:$0xff]
    %v1019 = vld [vmem:[#allocation10 + $0x28] sm:$0xff]
    %v1020 = vld [vmem:[#allocation10 + $0x30] sm:$0xff]
    %v1021 = vld [vmem:[#allocation10 + $0x38] sm:$0xff]
    %v1022 = vld [vmem:[#allocation10 + $0x40] sm:$0xff]
    %v1023 = vld [vmem:[#allocation10 + $0x48] sm:$0xff]
    %v1024 = vld [vmem:[#allocation10 + $0x50] sm:$0xff]
    %v1025 = vld [vmem:[#allocation10 + $0x58] sm:$0xff]
    %v1026 = vld [vmem:[#allocation10 + $0x60] sm:$0xff]
    %v1027 = vld [vmem:[#allocation10 + $0x68] sm:$0xff]
    %v1028 = vld [vmem:[#allocation10 + $0x70] sm:$0xff]
    %v1029 = vld [vmem:[#allocation10 + $0x78] sm:$0xff]
    %v1030 = vld [vmem:[#allocation10 + $0x80] sm:$0xff]
    %v1031 = vld [vmem:[#allocation10 + $0x88] sm:$0xff]
    %v1032 = vld [vmem:[#allocation10 + $0x90] sm:$0xff]
    %v1033 = vld [vmem:[#allocation10 + $0x98] sm:$0xff]
    %v1034 = vld [vmem:[#allocation10 + $0xa0] sm:$0xff]
    %v1035 = vld [vmem:[#allocation10 + $0xa8] sm:$0xff]
    %v1036 = vld [vmem:[#allocation10 + $0xb0] sm:$0xff]
    %v1037 = vld [vmem:[#allocation10 + $0xb8] sm:$0xff]
    %v1038 = vld [vmem:[#allocation10 + $0xc0] sm:$0xff]
    %v1039 = vld [vmem:[#allocation10 + $0xc8] sm:$0xff]
    %v1040 = vld [vmem:[#allocation10 + $0xd0] sm:$0xff]
    %v1041 = vld [vmem:[#allocation10 + $0xd8] sm:$0xff]
    %v1042 = vld [vmem:[#allocation10 + $0xe0] sm:$0xff]
    %v1043 = vld [vmem:[#allocation10 + $0xe8] sm:$0xff]
    %v1044 = vld [vmem:[#allocation10 + $0xf0] sm:$0xff]
    %v1045 = vld [vmem:[#allocation10 + $0xf8] sm:$0xff]
    %v1078 = vunpack.c.l.b16 %v1014
    %v1079 = vunpack.c.h.b16 %v1014
    %v1080 = vunpack.c.l.b16 %v1015
    %v1081 = vunpack.c.h.b16 %v1015
    %v1082 = vunpack.c.l.b16 %v1016
    %v1083 = vunpack.c.h.b16 %v1016
    %v1084 = vunpack.c.l.b16 %v1017
    %v1085 = vunpack.c.h.b16 %v1017
    %v1086 = vunpack.c.l.b16 %v1018
    %v1087 = vunpack.c.h.b16 %v1018
    %v1088 = vunpack.c.l.b16 %v1019
    %v1089 = vunpack.c.h.b16 %v1019
    %v1090 = vunpack.c.l.b16 %v1020
    %v1091 = vunpack.c.h.b16 %v1020
    %v1092 = vunpack.c.l.b16 %v1021
    %v1093 = vunpack.c.h.b16 %v1021
    %v1094 = vunpack.c.l.b16 %v1022
    %v1095 = vunpack.c.h.b16 %v1022
    %v1096 = vunpack.c.l.b16 %v1023
    %v1097 = vunpack.c.h.b16 %v1023
    %v1098 = vunpack.c.l.b16 %v1024
    %v1099 = vunpack.c.h.b16 %v1024
    %v1100 = vunpack.c.l.b16 %v1025
    %v1101 = vunpack.c.h.b16 %v1025
    %v1102 = vunpack.c.l.b16 %v1026
    %v1103 = vunpack.c.h.b16 %v1026
    %v1104 = vunpack.c.l.b16 %v1027
    %v1105 = vunpack.c.h.b16 %v1027
    %v1106 = vunpack.c.l.b16 %v1028
    %v1107 = vunpack.c.h.b16 %v1028
    %v1108 = vunpack.c.l.b16 %v1029
    %v1109 = vunpack.c.h.b16 %v1029
    %v1110 = vunpack.c.l.b16 %v1030
    %v1111 = vunpack.c.h.b16 %v1030
    %v1112 = vunpack.c.l.b16 %v1031
    %v1113 = vunpack.c.h.b16 %v1031
    %v1114 = vunpack.c.l.b16 %v1032
    %v1115 = vunpack.c.h.b16 %v1032
    %v1116 = vunpack.c.l.b16 %v1033
    %v1117 = vunpack.c.h.b16 %v1033
    %v1118 = vunpack.c.l.b16 %v1034
    %v1119 = vunpack.c.h.b16 %v1034
    %v1120 = vunpack.c.l.b16 %v1035
    %v1121 = vunpack.c.h.b16 %v1035
    %v1122 = vunpack.c.l.b16 %v1036
    %v1123 = vunpack.c.h.b16 %v1036
    %v1124 = vunpack.c.l.b16 %v1037
    %v1125 = vunpack.c.h.b16 %v1037
    %v1126 = vunpack.c.l.b16 %v1038
    %v1127 = vunpack.c.h.b16 %v1038
    %v1128 = vunpack.c.l.b16 %v1039
    %v1129 = vunpack.c.h.b16 %v1039
    %v1130 = vunpack.c.l.b16 %v1040
    %v1131 = vunpack.c.h.b16 %v1040
    %v1132 = vunpack.c.l.b16 %v1041
    %v1133 = vunpack.c.h.b16 %v1041
    %v1134 = vunpack.c.l.b16 %v1042
    %v1135 = vunpack.c.h.b16 %v1042
    %v1136 = vunpack.c.l.b16 %v1043
    %v1137 = vunpack.c.h.b16 %v1043
    %v1138 = vunpack.c.l.b16 %v1044
    %v1139 = vunpack.c.h.b16 %v1044
    %v1140 = vunpack.c.l.b16 %v1045
    %v1141 = vunpack.c.h.b16 %v1045
    %v1142 = vpack.c.b16 %v1082, %v1078
    %v1143 = vpack.c.b16 %v1083, %v1079
    %v1144 = vpack.c.b16 %v1084, %v1080
    %v1145 = vpack.c.b16 %v1085, %v1081
    %v1146 = vpack.c.b16 %v1090, %v1086
    %v1147 = vpack.c.b16 %v1091, %v1087
    %v1148 = vpack.c.b16 %v1092, %v1088
    %v1149 = vpack.c.b16 %v1093, %v1089
    %v1150 = vpack.c.b16 %v1098, %v1094
    %v1151 = vpack.c.b16 %v1099, %v1095
    %v1152 = vpack.c.b16 %v1100, %v1096
    %v1153 = vpack.c.b16 %v1101, %v1097
    %v1154 = vpack.c.b16 %v1106, %v1102
    %v1155 = vpack.c.b16 %v1107, %v1103
    %v1156 = vpack.c.b16 %v1108, %v1104
    %v1157 = vpack.c.b16 %v1109, %v1105
    %v1158 = vpack.c.b16 %v1114, %v1110
    %v1159 = vpack.c.b16 %v1115, %v1111
    %v1160 = vpack.c.b16 %v1116, %v1112
    %v1161 = vpack.c.b16 %v1117, %v1113
    %v1162 = vpack.c.b16 %v1122, %v1118
    %v1163 = vpack.c.b16 %v1123, %v1119
    %v1164 = vpack.c.b16 %v1124, %v1120
    %v1165 = vpack.c.b16 %v1125, %v1121
    %v1166 = vpack.c.b16 %v1130, %v1126
    %v1167 = vpack.c.b16 %v1131, %v1127
    %v1168 = vpack.c.b16 %v1132, %v1128
    %v1169 = vpack.c.b16 %v1133, %v1129
    %v1170 = vpack.c.b16 %v1138, %v1134
    %v1171 = vpack.c.b16 %v1139, %v1135
    %v1172 = vpack.c.b16 %v1140, %v1136
    %v1173 = vpack.c.b16 %v1141, %v1137
    %1206 = vmatprep.subr.bf16.mxu0 %v1171
    %1207 = vmatpush1.bf16.msra.mxu0 %v1170
    %1208 = vmatprep.subr.bf16.mxu0 %v1167
    %1209 = vmatpush1.bf16.msra.mxu0 %v1166
    %1210 = vmatprep.subr.bf16.mxu0 %v1163
    %1211 = vmatpush1.bf16.msra.mxu0 %v1162
    %1212 = vmatprep.subr.bf16.mxu0 %v1159
    %1213 = vmatpush1.bf16.msra.mxu0 %v1158
    %1214 = vmatprep.subr.bf16.mxu0 %v1155
    %1215 = vmatpush1.bf16.msra.mxu0 %v1154
    %1216 = vmatprep.subr.bf16.mxu0 %v1151
    %1217 = vmatpush1.bf16.msra.mxu0 %v1150
    %1218 = vmatprep.subr.bf16.mxu0 %v1147
    %1219 = vmatpush1.bf16.msra.mxu0 %v1146
    %1220 = vmatprep.subr.bf16.mxu0 %v1143
    %1221 = vmatpush1.bf16.msra.mxu0 %v1142
    %1222 = vmatprep.subr.bf16.mxu0 0
    %1223 = vmatpush2.bf16.msra.mxu0 0
    %1224 = vmatprep.subr.bf16.mxu0 0
    %1225 = vmatpush2.bf16.msra.mxu0 0
    %1226 = vmatprep.subr.bf16.mxu0 0
    %1227 = vmatpush2.bf16.msra.mxu0 0
    %1228 = vmatprep.subr.bf16.mxu0 0
    %1229 = vmatpush2.bf16.msra.mxu0 0
    %1230 = vmatprep.subr.bf16.mxu0 0
    %1231 = vmatpush2.bf16.msra.mxu0 0
    %1232 = vmatprep.subr.bf16.mxu0 0
    %1233 = vmatpush2.bf16.msra.mxu0 0
    %1234 = vmatprep.subr.bf16.mxu0 0
    %1235 = vmatpush2.bf16.msra.mxu0 0
    %1236 = vmatprep.subr.bf16.mxu0 0
    %1237 = vmatpush2.bf16.msra.mxu0 0
    %1238 = vmatprep.mubr.bf16.mxu0 0
    %1239 = vmatmul.mubr.bf16.gmra.mxu0 %v1013
    %v1240 = vpop.f32.mrf.mxu0
    %v1241 = vadd.f32 0.0, %v1240
    %v1242 = vpop.f32.mrf.mxu0
    %v1243 = vadd.f32 0.0, %v1242
    %v1244 = vpop.f32.mrf.mxu0
    %v1245 = vpop.f32.mrf.mxu0
    %1246 = vdwg.mxu0
    %1247 = vmatprep.subr.bf16.mxu0 %v1173
    %1248 = vmatpush1.bf16.msra.mxu0 %v1172
    %1249 = vmatprep.subr.bf16.mxu0 %v1169
    %1250 = vmatpush1.bf16.msra.mxu0 %v1168
    %1251 = vmatprep.subr.bf16.mxu0 %v1165
    %1252 = vmatpush1.bf16.msra.mxu0 %v1164
    %1253 = vmatprep.subr.bf16.mxu0 %v1161
    %1254 = vmatpush1.bf16.msra.mxu0 %v1160
    %1255 = vmatprep.subr.bf16.mxu0 %v1157
    %1256 = vmatpush1.bf16.msra.mxu0 %v1156
    %1257 = vmatprep.subr.bf16.mxu0 %v1153
    %1258 = vmatpush1.bf16.msra.mxu0 %v1152
    %1259 = vmatprep.subr.bf16.mxu0 %v1149
    %1260 = vmatpush1.bf16.msra.mxu0 %v1148
    %1261 = vmatprep.subr.bf16.mxu0 %v1145
    %1262 = vmatpush1.bf16.msra.mxu0 %v1144
    %1263 = vmatprep.subr.bf16.mxu0 0
    %1264 = vmatpush2.bf16.msra.mxu0 0
    %1265 = vmatprep.subr.bf16.mxu0 0
    %1266 = vmatpush2.bf16.msra.mxu0 0
    %1267 = vmatprep.subr.bf16.mxu0 0
    %1268 = vmatpush2.bf16.msra.mxu0 0
    %1269 = vmatprep.subr.bf16.mxu0 0
    %1270 = vmatpush2.bf16.msra.mxu0 0
    %1271 = vmatprep.subr.bf16.mxu0 0
    %1272 = vmatpush2.bf16.msra.mxu0 0
    %1273 = vmatprep.subr.bf16.mxu0 0
    %1274 = vmatpush2.bf16.msra.mxu0 0
    %1275 = vmatprep.subr.bf16.mxu0 0
    %1276 = vmatpush2.bf16.msra.mxu0 0
    %1277 = vmatprep.subr.bf16.mxu0 0
    %1278 = vmatpush2.bf16.msra.mxu0 0
    %1279 = vmatprep.mubr.bf16.mxu0 0
    %1280 = vmatmul.mubr.bf16.gmra.mxu0 %v1013
    %v1281 = vpop.f32.mrf.mxu0
    %v1282 = vadd.f32 0.0, %v1281
    %v1283 = vpop.f32.mrf.mxu0
    %v1284 = vadd.f32 0.0, %v1283
    %v1285 = vpop.f32.mrf.mxu0
    %v1286 = vpop.f32.mrf.mxu0
    %1287 = vdwg.mxu0
    %v1288 = vadd.f32 %v1009, %v1241
    %v1289 = vadd.f32 %v1010, %v1243
    %v1290 = vadd.f32 %v1011, %v1282
    %v1291 = vadd.f32 %v1012, %v1284
    %v1292 = vxor.u32 %v1288, 2147483648
    %v1293 = vmul.f32 %v1292, 1.442695
    %v1294 = vpow.pop %v1293
    %v1295 = vadd.f32 %v1294, 1.0
    %v1296 = vrcp.pop %v1295
    %v1297 = vmul.f32 1.0, %v1296
    %v1298 = vxor.u32 %v1289, 2147483648
    %v1299 = vmul.f32 %v1298, 1.442695
    %v1300 = vpow.pop %v1299
    %v1301 = vadd.f32 %v1300, 1.0
    %v1302 = vrcp.pop %v1301
    %v1303 = vmul.f32 1.0, %v1302
    %v1304 = vtanh.pop %v1290
    %v1305 = vxor.u32 %v1291, 2147483648
    %v1306 = vmul.f32 %v1305, 1.442695
    %v1307 = vpow.pop %v1306
    %v1308 = vadd.f32 %v1307, 1.0
    %v1309 = vrcp.pop %v1308
    %v1310 = vmul.f32 1.0, %v1309
    %v1311 = vmul.f32 %v1303, %v1003
    %v1312 = vmul.f32 %v1297, %v1304
    %v1313 = vadd.f32 %v1311, %v1312
    %v1314 = vtanh.pop %v1313
    %v1315 = vmul.f32 %v1310, %v1314
    %s1316 = scalar_lea.vmem [#allocation12], 24
    %1317 = vst [vmem:[%s1316] sm:$0xff] %v1315
    %s1318 = scalar_lea.vmem [#allocation4], 128
    %v1319 = vld [vmem:[%s1318] sm:$0xff]
    %v1320 = vld [vmem:[%s1318 + $0x8] sm:$0xff]
    %v1321 = vld [vmem:[%s1318 + $0x10] sm:$0xff]
    %v1322 = vld [vmem:[%s1318 + $0x18] sm:$0xff]
    %v1323 = vpack.c.bf16 %v1315, %v1315
    %v1324 = vld [vmem:[#allocation10] sm:$0xff]
    %v1325 = vld [vmem:[#allocation10 + $0x8] sm:$0xff]
    %v1326 = vld [vmem:[#allocation10 + $0x10] sm:$0xff]
    %v1327 = vld [vmem:[#allocation10 + $0x18] sm:$0xff]
    %v1328 = vld [vmem:[#allocation10 + $0x20] sm:$0xff]
    %v1329 = vld [vmem:[#allocation10 + $0x28] sm:$0xff]
    %v1330 = vld [vmem:[#allocation10 + $0x30] sm:$0xff]
    %v1331 = vld [vmem:[#allocation10 + $0x38] sm:$0xff]
    %v1332 = vld [vmem:[#allocation10 + $0x40] sm:$0xff]
    %v1333 = vld [vmem:[#allocation10 + $0x48] sm:$0xff]
    %v1334 = vld [vmem:[#allocation10 + $0x50] sm:$0xff]
    %v1335 = vld [vmem:[#allocation10 + $0x58] sm:$0xff]
    %v1336 = vld [vmem:[#allocation10 + $0x60] sm:$0xff]
    %v1337 = vld [vmem:[#allocation10 + $0x68] sm:$0xff]
    %v1338 = vld [vmem:[#allocation10 + $0x70] sm:$0xff]
    %v1339 = vld [vmem:[#allocation10 + $0x78] sm:$0xff]
    %v1340 = vld [vmem:[#allocation10 + $0x80] sm:$0xff]
    %v1341 = vld [vmem:[#allocation10 + $0x88] sm:$0xff]
    %v1342 = vld [vmem:[#allocation10 + $0x90] sm:$0xff]
    %v1343 = vld [vmem:[#allocation10 + $0x98] sm:$0xff]
    %v1344 = vld [vmem:[#allocation10 + $0xa0] sm:$0xff]
    %v1345 = vld [vmem:[#allocation10 + $0xa8] sm:$0xff]
    %v1346 = vld [vmem:[#allocation10 + $0xb0] sm:$0xff]
    %v1347 = vld [vmem:[#allocation10 + $0xb8] sm:$0xff]
    %v1348 = vld [vmem:[#allocation10 + $0xc0] sm:$0xff]
    %v1349 = vld [vmem:[#allocation10 + $0xc8] sm:$0xff]
    %v1350 = vld [vmem:[#allocation10 + $0xd0] sm:$0xff]
    %v1351 = vld [vmem:[#allocation10 + $0xd8] sm:$0xff]
    %v1352 = vld [vmem:[#allocation10 + $0xe0] sm:$0xff]
    %v1353 = vld [vmem:[#allocation10 + $0xe8] sm:$0xff]
    %v1354 = vld [vmem:[#allocation10 + $0xf0] sm:$0xff]
    %v1355 = vld [vmem:[#allocation10 + $0xf8] sm:$0xff]
    %v1388 = vunpack.c.l.b16 %v1324
    %v1389 = vunpack.c.h.b16 %v1324
    %v1390 = vunpack.c.l.b16 %v1325
    %v1391 = vunpack.c.h.b16 %v1325
    %v1392 = vunpack.c.l.b16 %v1326
    %v1393 = vunpack.c.h.b16 %v1326
    %v1394 = vunpack.c.l.b16 %v1327
    %v1395 = vunpack.c.h.b16 %v1327
    %v1396 = vunpack.c.l.b16 %v1328
    %v1397 = vunpack.c.h.b16 %v1328
    %v1398 = vunpack.c.l.b16 %v1329
    %v1399 = vunpack.c.h.b16 %v1329
    %v1400 = vunpack.c.l.b16 %v1330
    %v1401 = vunpack.c.h.b16 %v1330
    %v1402 = vunpack.c.l.b16 %v1331
    %v1403 = vunpack.c.h.b16 %v1331
    %v1404 = vunpack.c.l.b16 %v1332
    %v1405 = vunpack.c.h.b16 %v1332
    %v1406 = vunpack.c.l.b16 %v1333
    %v1407 = vunpack.c.h.b16 %v1333
    %v1408 = vunpack.c.l.b16 %v1334
    %v1409 = vunpack.c.h.b16 %v1334
    %v1410 = vunpack.c.l.b16 %v1335
    %v1411 = vunpack.c.h.b16 %v1335
    %v1412 = vunpack.c.l.b16 %v1336
    %v1413 = vunpack.c.h.b16 %v1336
    %v1414 = vunpack.c.l.b16 %v1337
    %v1415 = vunpack.c.h.b16 %v1337
    %v1416 = vunpack.c.l.b16 %v1338
    %v1417 = vunpack.c.h.b16 %v1338
    %v1418 = vunpack.c.l.b16 %v1339
    %v1419 = vunpack.c.h.b16 %v1339
    %v1420 = vunpack.c.l.b16 %v1340
    %v1421 = vunpack.c.h.b16 %v1340
    %v1422 = vunpack.c.l.b16 %v1341
    %v1423 = vunpack.c.h.b16 %v1341
    %v1424 = vunpack.c.l.b16 %v1342
    %v1425 = vunpack.c.h.b16 %v1342
    %v1426 = vunpack.c.l.b16 %v1343
    %v1427 = vunpack.c.h.b16 %v1343
    %v1428 = vunpack.c.l.b16 %v1344
    %v1429 = vunpack.c.h.b16 %v1344
    %v1430 = vunpack.c.l.b16 %v1345
    %v1431 = vunpack.c.h.b16 %v1345
    %v1432 = vunpack.c.l.b16 %v1346
    %v1433 = vunpack.c.h.b16 %v1346
    %v1434 = vunpack.c.l.b16 %v1347
    %v1435 = vunpack.c.h.b16 %v1347
    %v1436 = vunpack.c.l.b16 %v1348
    %v1437 = vunpack.c.h.b16 %v1348
    %v1438 = vunpack.c.l.b16 %v1349
    %v1439 = vunpack.c.h.b16 %v1349
    %v1440 = vunpack.c.l.b16 %v1350
    %v1441 = vunpack.c.h.b16 %v1350
    %v1442 = vunpack.c.l.b16 %v1351
    %v1443 = vunpack.c.h.b16 %v1351
    %v1444 = vunpack.c.l.b16 %v1352
    %v1445 = vunpack.c.h.b16 %v1352
    %v1446 = vunpack.c.l.b16 %v1353
    %v1447 = vunpack.c.h.b16 %v1353
    %v1448 = vunpack.c.l.b16 %v1354
    %v1449 = vunpack.c.h.b16 %v1354
    %v1450 = vunpack.c.l.b16 %v1355
    %v1451 = vunpack.c.h.b16 %v1355
    %v1452 = vpack.c.b16 %v1392, %v1388
    %v1453 = vpack.c.b16 %v1393, %v1389
    %v1454 = vpack.c.b16 %v1394, %v1390
    %v1455 = vpack.c.b16 %v1395, %v1391
    %v1456 = vpack.c.b16 %v1400, %v1396
    %v1457 = vpack.c.b16 %v1401, %v1397
    %v1458 = vpack.c.b16 %v1402, %v1398
    %v1459 = vpack.c.b16 %v1403, %v1399
    %v1460 = vpack.c.b16 %v1408, %v1404
    %v1461 = vpack.c.b16 %v1409, %v1405
    %v1462 = vpack.c.b16 %v1410, %v1406
    %v1463 = vpack.c.b16 %v1411, %v1407
    %v1464 = vpack.c.b16 %v1416, %v1412
    %v1465 = vpack.c.b16 %v1417, %v1413
    %v1466 = vpack.c.b16 %v1418, %v1414
    %v1467 = vpack.c.b16 %v1419, %v1415
    %v1468 = vpack.c.b16 %v1424, %v1420
    %v1469 = vpack.c.b16 %v1425, %v1421
    %v1470 = vpack.c.b16 %v1426, %v1422
    %v1471 = vpack.c.b16 %v1427, %v1423
    %v1472 = vpack.c.b16 %v1432, %v1428
    %v1473 = vpack.c.b16 %v1433, %v1429
    %v1474 = vpack.c.b16 %v1434, %v1430
    %v1475 = vpack.c.b16 %v1435, %v1431
    %v1476 = vpack.c.b16 %v1440, %v1436
    %v1477 = vpack.c.b16 %v1441, %v1437
    %v1478 = vpack.c.b16 %v1442, %v1438
    %v1479 = vpack.c.b16 %v1443, %v1439
    %v1480 = vpack.c.b16 %v1448, %v1444
    %v1481 = vpack.c.b16 %v1449, %v1445
    %v1482 = vpack.c.b16 %v1450, %v1446
    %v1483 = vpack.c.b16 %v1451, %v1447
    %1516 = vmatprep.subr.bf16.mxu0 %v1481
    %1517 = vmatpush1.bf16.msra.mxu0 %v1480
    %1518 = vmatprep.subr.bf16.mxu0 %v1477
    %1519 = vmatpush1.bf16.msra.mxu0 %v1476
    %1520 = vmatprep.subr.bf16.mxu0 %v1473
    %1521 = vmatpush1.bf16.msra.mxu0 %v1472
    %1522 = vmatprep.subr.bf16.mxu0 %v1469
    %1523 = vmatpush1.bf16.msra.mxu0 %v1468
    %1524 = vmatprep.subr.bf16.mxu0 %v1465
    %1525 = vmatpush1.bf16.msra.mxu0 %v1464
    %1526 = vmatprep.subr.bf16.mxu0 %v1461
    %1527 = vmatpush1.bf16.msra.mxu0 %v1460
    %1528 = vmatprep.subr.bf16.mxu0 %v1457
    %1529 = vmatpush1.bf16.msra.mxu0 %v1456
    %1530 = vmatprep.subr.bf16.mxu0 %v1453
    %1531 = vmatpush1.bf16.msra.mxu0 %v1452
    %1532 = vmatprep.subr.bf16.mxu0 0
    %1533 = vmatpush2.bf16.msra.mxu0 0
    %1534 = vmatprep.subr.bf16.mxu0 0
    %1535 = vmatpush2.bf16.msra.mxu0 0
    %1536 = vmatprep.subr.bf16.mxu0 0
    %1537 = vmatpush2.bf16.msra.mxu0 0
    %1538 = vmatprep.subr.bf16.mxu0 0
    %1539 = vmatpush2.bf16.msra.mxu0 0
    %1540 = vmatprep.subr.bf16.mxu0 0
    %1541 = vmatpush2.bf16.msra.mxu0 0
    %1542 = vmatprep.subr.bf16.mxu0 0
    %1543 = vmatpush2.bf16.msra.mxu0 0
    %1544 = vmatprep.subr.bf16.mxu0 0
    %1545 = vmatpush2.bf16.msra.mxu0 0
    %1546 = vmatprep.subr.bf16.mxu0 0
    %1547 = vmatpush2.bf16.msra.mxu0 0
    %1548 = vmatprep.mubr.bf16.mxu0 0
    %1549 = vmatmul.mubr.bf16.gmra.mxu0 %v1323
    %v1550 = vpop.f32.mrf.mxu0
    %v1551 = vadd.f32 0.0, %v1550
    %v1552 = vpop.f32.mrf.mxu0
    %v1553 = vadd.f32 0.0, %v1552
    %v1554 = vpop.f32.mrf.mxu0
    %v1555 = vpop.f32.mrf.mxu0
    %1556 = vdwg.mxu0
    %1557 = vmatprep.subr.bf16.mxu0 %v1483
    %1558 = vmatpush1.bf16.msra.mxu0 %v1482
    %1559 = vmatprep.subr.bf16.mxu0 %v1479
    %1560 = vmatpush1.bf16.msra.mxu0 %v1478
    %1561 = vmatprep.subr.bf16.mxu0 %v1475
    %1562 = vmatpush1.bf16.msra.mxu0 %v1474
    %1563 = vmatprep.subr.bf16.mxu0 %v1471
    %1564 = vmatpush1.bf16.msra.mxu0 %v1470
    %1565 = vmatprep.subr.bf16.mxu0 %v1467
    %1566 = vmatpush1.bf16.msra.mxu0 %v1466
    %1567 = vmatprep.subr.bf16.mxu0 %v1463
    %1568 = vmatpush1.bf16.msra.mxu0 %v1462
    %1569 = vmatprep.subr.bf16.mxu0 %v1459
    %1570 = vmatpush1.bf16.msra.mxu0 %v1458
    %1571 = vmatprep.subr.bf16.mxu0 %v1455
    %1572 = vmatpush1.bf16.msra.mxu0 %v1454
    %1573 = vmatprep.subr.bf16.mxu0 0
    %1574 = vmatpush2.bf16.msra.mxu0 0
    %1575 = vmatprep.subr.bf16.mxu0 0
    %1576 = vmatpush2.bf16.msra.mxu0 0
    %1577 = vmatprep.subr.bf16.mxu0 0
    %1578 = vmatpush2.bf16.msra.mxu0 0
    %1579 = vmatprep.subr.bf16.mxu0 0
    %1580 = vmatpush2.bf16.msra.mxu0 0
    %1581 = vmatprep.subr.bf16.mxu0 0
    %1582 = vmatpush2.bf16.msra.mxu0 0
    %1583 = vmatprep.subr.bf16.mxu0 0
    %1584 = vmatpush2.bf16.msra.mxu0 0
    %1585 = vmatprep.subr.bf16.mxu0 0
    %1586 = vmatpush2.bf16.msra.mxu0 0
    %1587 = vmatprep.subr.bf16.mxu0 0
    %1588 = vmatpush2.bf16.msra.mxu0 0
    %1589 = vmatprep.mubr.bf16.mxu0 0
    %1590 = vmatmul.mubr.bf16.gmra.mxu0 %v1323
    %v1591 = vpop.f32.mrf.mxu0
    %v1592 = vadd.f32 0.0, %v1591
    %v1593 = vpop.f32.mrf.mxu0
    %v1594 = vadd.f32 0.0, %v1593
    %v1595 = vpop.f32.mrf.mxu0
    %v1596 = vpop.f32.mrf.mxu0
    %1597 = vdwg.mxu0
    %v1598 = vadd.f32 %v1319, %v1551
    %v1599 = vadd.f32 %v1320, %v1553
    %v1600 = vadd.f32 %v1321, %v1592
    %v1601 = vadd.f32 %v1322, %v1594
    %v1602 = vxor.u32 %v1598, 2147483648
    %v1603 = vmul.f32 %v1602, 1.442695
    %v1604 = vpow.pop %v1603
    %v1605 = vadd.f32 %v1604, 1.0
    %v1606 = vrcp.pop %v1605
    %v1607 = vmul.f32 1.0, %v1606
    %v1608 = vxor.u32 %v1599, 2147483648
    %v1609 = vmul.f32 %v1608, 1.442695
    %v1610 = vpow.pop %v1609
    %v1611 = vadd.f32 %v1610, 1.0
    %v1612 = vrcp.pop %v1611
    %v1613 = vmul.f32 1.0, %v1612
    %v1614 = vtanh.pop %v1600
    %v1615 = vxor.u32 %v1601, 2147483648
    %v1616 = vmul.f32 %v1615, 1.442695
    %v1617 = vpow.pop %v1616
    %v1618 = vadd.f32 %v1617, 1.0
    %v1619 = vrcp.pop %v1618
    %v1620 = vmul.f32 1.0, %v1619
    %v1621 = vmul.f32 %v1613, %v1313
    %v1622 = vmul.f32 %v1607, %v1614
    %v1623 = vadd.f32 %v1621, %v1622
    %v1624 = vtanh.pop %v1623
    %v1625 = vmul.f32 %v1620, %v1624
    %s1626 = scalar_lea.vmem [#allocation12], 32
    %1627 = vst [vmem:[%s1626] sm:$0xff] %v1625
    %s1628 = scalar_lea.vmem [#allocation4], 160
    %v1629 = vld [vmem:[%s1628] sm:$0xff]
    %v1630 = vld [vmem:[%s1628 + $0x8] sm:$0xff]
    %v1631 = vld [vmem:[%s1628 + $0x10] sm:$0xff]
    %v1632 = vld [vmem:[%s1628 + $0x18] sm:$0xff]
    %v1633 = vpack.c.bf16 %v1625, %v1625
    %v1634 = vld [vmem:[#allocation10] sm:$0xff]
    %v1635 = vld [vmem:[#allocation10 + $0x8] sm:$0xff]
    %v1636 = vld [vmem:[#allocation10 + $0x10] sm:$0xff]
    %v1637 = vld [vmem:[#allocation10 + $0x18] sm:$0xff]
    %v1638 = vld [vmem:[#allocation10 + $0x20] sm:$0xff]
    %v1639 = vld [vmem:[#allocation10 + $0x28] sm:$0xff]
    %v1640 = vld [vmem:[#allocation10 + $0x30] sm:$0xff]
    %v1641 = vld [vmem:[#allocation10 + $0x38] sm:$0xff]
    %v1642 = vld [vmem:[#allocation10 + $0x40] sm:$0xff]
    %v1643 = vld [vmem:[#allocation10 + $0x48] sm:$0xff]
    %v1644 = vld [vmem:[#allocation10 + $0x50] sm:$0xff]
    %v1645 = vld [vmem:[#allocation10 + $0x58] sm:$0xff]
    %v1646 = vld [vmem:[#allocation10 + $0x60] sm:$0xff]
    %v1647 = vld [vmem:[#allocation10 + $0x68] sm:$0xff]
    %v1648 = vld [vmem:[#allocation10 + $0x70] sm:$0xff]
    %v1649 = vld [vmem:[#allocation10 + $0x78] sm:$0xff]
    %v1650 = vld [vmem:[#allocation10 + $0x80] sm:$0xff]
    %v1651 = vld [vmem:[#allocation10 + $0x88] sm:$0xff]
    %v1652 = vld [vmem:[#allocation10 + $0x90] sm:$0xff]
    %v1653 = vld [vmem:[#allocation10 + $0x98] sm:$0xff]
    %v1654 = vld [vmem:[#allocation10 + $0xa0] sm:$0xff]
    %v1655 = vld [vmem:[#allocation10 + $0xa8] sm:$0xff]
    %v1656 = vld [vmem:[#allocation10 + $0xb0] sm:$0xff]
    %v1657 = vld [vmem:[#allocation10 + $0xb8] sm:$0xff]
    %v1658 = vld [vmem:[#allocation10 + $0xc0] sm:$0xff]
    %v1659 = vld [vmem:[#allocation10 + $0xc8] sm:$0xff]
    %v1660 = vld [vmem:[#allocation10 + $0xd0] sm:$0xff]
    %v1661 = vld [vmem:[#allocation10 + $0xd8] sm:$0xff]
    %v1662 = vld [vmem:[#allocation10 + $0xe0] sm:$0xff]
    %v1663 = vld [vmem:[#allocation10 + $0xe8] sm:$0xff]
    %v1664 = vld [vmem:[#allocation10 + $0xf0] sm:$0xff]
    %v1665 = vld [vmem:[#allocation10 + $0xf8] sm:$0xff]
    %v1698 = vunpack.c.l.b16 %v1634
    %v1699 = vunpack.c.h.b16 %v1634
    %v1700 = vunpack.c.l.b16 %v1635
    %v1701 = vunpack.c.h.b16 %v1635
    %v1702 = vunpack.c.l.b16 %v1636
    %v1703 = vunpack.c.h.b16 %v1636
    %v1704 = vunpack.c.l.b16 %v1637
    %v1705 = vunpack.c.h.b16 %v1637
    %v1706 = vunpack.c.l.b16 %v1638
    %v1707 = vunpack.c.h.b16 %v1638
    %v1708 = vunpack.c.l.b16 %v1639
    %v1709 = vunpack.c.h.b16 %v1639
    %v1710 = vunpack.c.l.b16 %v1640
    %v1711 = vunpack.c.h.b16 %v1640
    %v1712 = vunpack.c.l.b16 %v1641
    %v1713 = vunpack.c.h.b16 %v1641
    %v1714 = vunpack.c.l.b16 %v1642
    %v1715 = vunpack.c.h.b16 %v1642
    %v1716 = vunpack.c.l.b16 %v1643
    %v1717 = vunpack.c.h.b16 %v1643
    %v1718 = vunpack.c.l.b16 %v1644
    %v1719 = vunpack.c.h.b16 %v1644
    %v1720 = vunpack.c.l.b16 %v1645
    %v1721 = vunpack.c.h.b16 %v1645
    %v1722 = vunpack.c.l.b16 %v1646
    %v1723 = vunpack.c.h.b16 %v1646
    %v1724 = vunpack.c.l.b16 %v1647
    %v1725 = vunpack.c.h.b16 %v1647
    %v1726 = vunpack.c.l.b16 %v1648
    %v1727 = vunpack.c.h.b16 %v1648
    %v1728 = vunpack.c.l.b16 %v1649
    %v1729 = vunpack.c.h.b16 %v1649
    %v1730 = vunpack.c.l.b16 %v1650
    %v1731 = vunpack.c.h.b16 %v1650
    %v1732 = vunpack.c.l.b16 %v1651
    %v1733 = vunpack.c.h.b16 %v1651
    %v1734 = vunpack.c.l.b16 %v1652
    %v1735 = vunpack.c.h.b16 %v1652
    %v1736 = vunpack.c.l.b16 %v1653
    %v1737 = vunpack.c.h.b16 %v1653
    %v1738 = vunpack.c.l.b16 %v1654
    %v1739 = vunpack.c.h.b16 %v1654
    %v1740 = vunpack.c.l.b16 %v1655
    %v1741 = vunpack.c.h.b16 %v1655
    %v1742 = vunpack.c.l.b16 %v1656
    %v1743 = vunpack.c.h.b16 %v1656
    %v1744 = vunpack.c.l.b16 %v1657
    %v1745 = vunpack.c.h.b16 %v1657
    %v1746 = vunpack.c.l.b16 %v1658
    %v1747 = vunpack.c.h.b16 %v1658
    %v1748 = vunpack.c.l.b16 %v1659
    %v1749 = vunpack.c.h.b16 %v1659
    %v1750 = vunpack.c.l.b16 %v1660
    %v1751 = vunpack.c.h.b16 %v1660
    %v1752 = vunpack.c.l.b16 %v1661
    %v1753 = vunpack.c.h.b16 %v1661
    %v1754 = vunpack.c.l.b16 %v1662
    %v1755 = vunpack.c.h.b16 %v1662
    %v1756 = vunpack.c.l.b16 %v1663
    %v1757 = vunpack.c.h.b16 %v1663
    %v1758 = vunpack.c.l.b16 %v1664
    %v1759 = vunpack.c.h.b16 %v1664
    %v1760 = vunpack.c.l.b16 %v1665
    %v1761 = vunpack.c.h.b16 %v1665
    %v1762 = vpack.c.b16 %v1702, %v1698
    %v1763 = vpack.c.b16 %v1703, %v1699
    %v1764 = vpack.c.b16 %v1704, %v1700
    %v1765 = vpack.c.b16 %v1705, %v1701
    %v1766 = vpack.c.b16 %v1710, %v1706
    %v1767 = vpack.c.b16 %v1711, %v1707
    %v1768 = vpack.c.b16 %v1712, %v1708
    %v1769 = vpack.c.b16 %v1713, %v1709
    %v1770 = vpack.c.b16 %v1718, %v1714
    %v1771 = vpack.c.b16 %v1719, %v1715
    %v1772 = vpack.c.b16 %v1720, %v1716
    %v1773 = vpack.c.b16 %v1721, %v1717
    %v1774 = vpack.c.b16 %v1726, %v1722
    %v1775 = vpack.c.b16 %v1727, %v1723
    %v1776 = vpack.c.b16 %v1728, %v1724
    %v1777 = vpack.c.b16 %v1729, %v1725
    %v1778 = vpack.c.b16 %v1734, %v1730
    %v1779 = vpack.c.b16 %v1735, %v1731
    %v1780 = vpack.c.b16 %v1736, %v1732
    %v1781 = vpack.c.b16 %v1737, %v1733
    %v1782 = vpack.c.b16 %v1742, %v1738
    %v1783 = vpack.c.b16 %v1743, %v1739
    %v1784 = vpack.c.b16 %v1744, %v1740
    %v1785 = vpack.c.b16 %v1745, %v1741
    %v1786 = vpack.c.b16 %v1750, %v1746
    %v1787 = vpack.c.b16 %v1751, %v1747
    %v1788 = vpack.c.b16 %v1752, %v1748
    %v1789 = vpack.c.b16 %v1753, %v1749
    %v1790 = vpack.c.b16 %v1758, %v1754
    %v1791 = vpack.c.b16 %v1759, %v1755
    %v1792 = vpack.c.b16 %v1760, %v1756
    %v1793 = vpack.c.b16 %v1761, %v1757
    %1826 = vmatprep.subr.bf16.mxu0 %v1791
    %1827 = vmatpush1.bf16.msra.mxu0 %v1790
    %1828 = vmatprep.subr.bf16.mxu0 %v1787
    %1829 = vmatpush1.bf16.msra.mxu0 %v1786
    %1830 = vmatprep.subr.bf16.mxu0 %v1783
    %1831 = vmatpush1.bf16.msra.mxu0 %v1782
    %1832 = vmatprep.subr.bf16.mxu0 %v1779
    %1833 = vmatpush1.bf16.msra.mxu0 %v1778
    %1834 = vmatprep.subr.bf16.mxu0 %v1775
    %1835 = vmatpush1.bf16.msra.mxu0 %v1774
    %1836 = vmatprep.subr.bf16.mxu0 %v1771
    %1837 = vmatpush1.bf16.msra.mxu0 %v1770
    %1838 = vmatprep.subr.bf16.mxu0 %v1767
    %1839 = vmatpush1.bf16.msra.mxu0 %v1766
    %1840 = vmatprep.subr.bf16.mxu0 %v1763
    %1841 = vmatpush1.bf16.msra.mxu0 %v1762
    %1842 = vmatprep.subr.bf16.mxu0 0
    %1843 = vmatpush2.bf16.msra.mxu0 0
    %1844 = vmatprep.subr.bf16.mxu0 0
    %1845 = vmatpush2.bf16.msra.mxu0 0
    %1846 = vmatprep.subr.bf16.mxu0 0
    %1847 = vmatpush2.bf16.msra.mxu0 0
    %1848 = vmatprep.subr.bf16.mxu0 0
    %1849 = vmatpush2.bf16.msra.mxu0 0
    %1850 = vmatprep.subr.bf16.mxu0 0
    %1851 = vmatpush2.bf16.msra.mxu0 0
    %1852 = vmatprep.subr.bf16.mxu0 0
    %1853 = vmatpush2.bf16.msra.mxu0 0
    %1854 = vmatprep.subr.bf16.mxu0 0
    %1855 = vmatpush2.bf16.msra.mxu0 0
    %1856 = vmatprep.subr.bf16.mxu0 0
    %1857 = vmatpush2.bf16.msra.mxu0 0
    %1858 = vmatprep.mubr.bf16.mxu0 0
    %1859 = vmatmul.mubr.bf16.gmra.mxu0 %v1633
    %v1860 = vpop.f32.mrf.mxu0
    %v1861 = vadd.f32 0.0, %v1860
    %v1862 = vpop.f32.mrf.mxu0
    %v1863 = vadd.f32 0.0, %v1862
    %v1864 = vpop.f32.mrf.mxu0
    %v1865 = vpop.f32.mrf.mxu0
    %1866 = vdwg.mxu0
    %1867 = vmatprep.subr.bf16.mxu0 %v1793
    %1868 = vmatpush1.bf16.msra.mxu0 %v1792
    %1869 = vmatprep.subr.bf16.mxu0 %v1789
    %1870 = vmatpush1.bf16.msra.mxu0 %v1788
    %1871 = vmatprep.subr.bf16.mxu0 %v1785
    %1872 = vmatpush1.bf16.msra.mxu0 %v1784
    %1873 = vmatprep.subr.bf16.mxu0 %v1781
    %1874 = vmatpush1.bf16.msra.mxu0 %v1780
    %1875 = vmatprep.subr.bf16.mxu0 %v1777
    %1876 = vmatpush1.bf16.msra.mxu0 %v1776
    %1877 = vmatprep.subr.bf16.mxu0 %v1773
    %1878 = vmatpush1.bf16.msra.mxu0 %v1772
    %1879 = vmatprep.subr.bf16.mxu0 %v1769
    %1880 = vmatpush1.bf16.msra.mxu0 %v1768
    %1881 = vmatprep.subr.bf16.mxu0 %v1765
    %1882 = vmatpush1.bf16.msra.mxu0 %v1764
    %1883 = vmatprep.subr.bf16.mxu0 0
    %1884 = vmatpush2.bf16.msra.mxu0 0
    %1885 = vmatprep.subr.bf16.mxu0 0
    %1886 = vmatpush2.bf16.msra.mxu0 0
    %1887 = vmatprep.subr.bf16.mxu0 0
    %1888 = vmatpush2.bf16.msra.mxu0 0
    %1889 = vmatprep.subr.bf16.mxu0 0
    %1890 = vmatpush2.bf16.msra.mxu0 0
    %1891 = vmatprep.subr.bf16.mxu0 0
    %1892 = vmatpush2.bf16.msra.mxu0 0
    %1893 = vmatprep.subr.bf16.mxu0 0
    %1894 = vmatpush2.bf16.msra.mxu0 0
    %1895 = vmatprep.subr.bf16.mxu0 0
    %1896 = vmatpush2.bf16.msra.mxu0 0
    %1897 = vmatprep.subr.bf16.mxu0 0
    %1898 = vmatpush2.bf16.msra.mxu0 0
    %1899 = vmatprep.mubr.bf16.mxu0 0
    %1900 = vmatmul.mubr.bf16.gmra.mxu0 %v1633
    %v1901 = vpop.f32.mrf.mxu0
    %v1902 = vadd.f32 0.0, %v1901
    %v1903 = vpop.f32.mrf.mxu0
    %v1904 = vadd.f32 0.0, %v1903
    %v1905 = vpop.f32.mrf.mxu0
    %v1906 = vpop.f32.mrf.mxu0
    %1907 = vdwg.mxu0
    %v1908 = vadd.f32 %v1629, %v1861
    %v1909 = vadd.f32 %v1630, %v1863
    %v1910 = vadd.f32 %v1631, %v1902
    %v1911 = vadd.f32 %v1632, %v1904
    %v1912 = vxor.u32 %v1908, 2147483648
    %v1913 = vmul.f32 %v1912, 1.442695
    %v1914 = vpow.pop %v1913
    %v1915 = vadd.f32 %v1914, 1.0
    %v1916 = vrcp.pop %v1915
    %v1917 = vmul.f32 1.0, %v1916
    %v1918 = vxor.u32 %v1909, 2147483648
    %v1919 = vmul.f32 %v1918, 1.442695
    %v1920 = vpow.pop %v1919
    %v1921 = vadd.f32 %v1920, 1.0
    %v1922 = vrcp.pop %v1921
    %v1923 = vmul.f32 1.0, %v1922
    %v1924 = vtanh.pop %v1910
    %v1925 = vxor.u32 %v1911, 2147483648
    %v1926 = vmul.f32 %v1925, 1.442695
    %v1927 = vpow.pop %v1926
    %v1928 = vadd.f32 %v1927, 1.0
    %v1929 = vrcp.pop %v1928
    %v1930 = vmul.f32 1.0, %v1929
    %v1931 = vmul.f32 %v1923, %v1623
    %v1932 = vmul.f32 %v1917, %v1924
    %v1933 = vadd.f32 %v1931, %v1932
    %v1934 = vtanh.pop %v1933
    %v1935 = vmul.f32 %v1930, %v1934
    %s1936 = scalar_lea.vmem [#allocation12], 40
    %1937 = vst [vmem:[%s1936] sm:$0xff] %v1935
    %s1938 = scalar_lea.vmem [#allocation4], 192
    %v1939 = vld [vmem:[%s1938] sm:$0xff]
    %v1940 = vld [vmem:[%s1938 + $0x8] sm:$0xff]
    %v1941 = vld [vmem:[%s1938 + $0x10] sm:$0xff]
    %v1942 = vld [vmem:[%s1938 + $0x18] sm:$0xff]
    %v1943 = vpack.c.bf16 %v1935, %v1935
    %v1944 = vld [vmem:[#allocation10] sm:$0xff]
    %v1945 = vld [vmem:[#allocation10 + $0x8] sm:$0xff]
    %v1946 = vld [vmem:[#allocation10 + $0x10] sm:$0xff]
    %v1947 = vld [vmem:[#allocation10 + $0x18] sm:$0xff]
    %v1948 = vld [vmem:[#allocation10 + $0x20] sm:$0xff]
    %v1949 = vld [vmem:[#allocation10 + $0x28] sm:$0xff]
    %v1950 = vld [vmem:[#allocation10 + $0x30] sm:$0xff]
    %v1951 = vld [vmem:[#allocation10 + $0x38] sm:$0xff]
    %v1952 = vld [vmem:[#allocation10 + $0x40] sm:$0xff]
    %v1953 = vld [vmem:[#allocation10 + $0x48] sm:$0xff]
    %v1954 = vld [vmem:[#allocation10 + $0x50] sm:$0xff]
    %v1955 = vld [vmem:[#allocation10 + $0x58] sm:$0xff]
    %v1956 = vld [vmem:[#allocation10 + $0x60] sm:$0xff]
    %v1957 = vld [vmem:[#allocation10 + $0x68] sm:$0xff]
    %v1958 = vld [vmem:[#allocation10 + $0x70] sm:$0xff]
    %v1959 = vld [vmem:[#allocation10 + $0x78] sm:$0xff]
    %v1960 = vld [vmem:[#allocation10 + $0x80] sm:$0xff]
    %v1961 = vld [vmem:[#allocation10 + $0x88] sm:$0xff]
    %v1962 = vld [vmem:[#allocation10 + $0x90] sm:$0xff]
    %v1963 = vld [vmem:[#allocation10 + $0x98] sm:$0xff]
    %v1964 = vld [vmem:[#allocation10 + $0xa0] sm:$0xff]
    %v1965 = vld [vmem:[#allocation10 + $0xa8] sm:$0xff]
    %v1966 = vld [vmem:[#allocation10 + $0xb0] sm:$0xff]
    %v1967 = vld [vmem:[#allocation10 + $0xb8] sm:$0xff]
    %v1968 = vld [vmem:[#allocation10 + $0xc0] sm:$0xff]
    %v1969 = vld [vmem:[#allocation10 + $0xc8] sm:$0xff]
    %v1970 = vld [vmem:[#allocation10 + $0xd0] sm:$0xff]
    %v1971 = vld [vmem:[#allocation10 + $0xd8] sm:$0xff]
    %v1972 = vld [vmem:[#allocation10 + $0xe0] sm:$0xff]
    %v1973 = vld [vmem:[#allocation10 + $0xe8] sm:$0xff]
    %v1974 = vld [vmem:[#allocation10 + $0xf0] sm:$0xff]
    %v1975 = vld [vmem:[#allocation10 + $0xf8] sm:$0xff]
    %v2008 = vunpack.c.l.b16 %v1944
    %v2009 = vunpack.c.h.b16 %v1944
    %v2010 = vunpack.c.l.b16 %v1945
    %v2011 = vunpack.c.h.b16 %v1945
    %v2012 = vunpack.c.l.b16 %v1946
    %v2013 = vunpack.c.h.b16 %v1946
    %v2014 = vunpack.c.l.b16 %v1947
    %v2015 = vunpack.c.h.b16 %v1947
    %v2016 = vunpack.c.l.b16 %v1948
    %v2017 = vunpack.c.h.b16 %v1948
    %v2018 = vunpack.c.l.b16 %v1949
    %v2019 = vunpack.c.h.b16 %v1949
    %v2020 = vunpack.c.l.b16 %v1950
    %v2021 = vunpack.c.h.b16 %v1950
    %v2022 = vunpack.c.l.b16 %v1951
    %v2023 = vunpack.c.h.b16 %v1951
    %v2024 = vunpack.c.l.b16 %v1952
    %v2025 = vunpack.c.h.b16 %v1952
    %v2026 = vunpack.c.l.b16 %v1953
    %v2027 = vunpack.c.h.b16 %v1953
    %v2028 = vunpack.c.l.b16 %v1954
    %v2029 = vunpack.c.h.b16 %v1954
    %v2030 = vunpack.c.l.b16 %v1955
    %v2031 = vunpack.c.h.b16 %v1955
    %v2032 = vunpack.c.l.b16 %v1956
    %v2033 = vunpack.c.h.b16 %v1956
    %v2034 = vunpack.c.l.b16 %v1957
    %v2035 = vunpack.c.h.b16 %v1957
    %v2036 = vunpack.c.l.b16 %v1958
    %v2037 = vunpack.c.h.b16 %v1958
    %v2038 = vunpack.c.l.b16 %v1959
    %v2039 = vunpack.c.h.b16 %v1959
    %v2040 = vunpack.c.l.b16 %v1960
    %v2041 = vunpack.c.h.b16 %v1960
    %v2042 = vunpack.c.l.b16 %v1961
    %v2043 = vunpack.c.h.b16 %v1961
    %v2044 = vunpack.c.l.b16 %v1962
    %v2045 = vunpack.c.h.b16 %v1962
    %v2046 = vunpack.c.l.b16 %v1963
    %v2047 = vunpack.c.h.b16 %v1963
    %v2048 = vunpack.c.l.b16 %v1964
    %v2049 = vunpack.c.h.b16 %v1964
    %v2050 = vunpack.c.l.b16 %v1965
    %v2051 = vunpack.c.h.b16 %v1965
    %v2052 = vunpack.c.l.b16 %v1966
    %v2053 = vunpack.c.h.b16 %v1966
    %v2054 = vunpack.c.l.b16 %v1967
    %v2055 = vunpack.c.h.b16 %v1967
    %v2056 = vunpack.c.l.b16 %v1968
    %v2057 = vunpack.c.h.b16 %v1968
    %v2058 = vunpack.c.l.b16 %v1969
    %v2059 = vunpack.c.h.b16 %v1969
    %v2060 = vunpack.c.l.b16 %v1970
    %v2061 = vunpack.c.h.b16 %v1970
    %v2062 = vunpack.c.l.b16 %v1971
    %v2063 = vunpack.c.h.b16 %v1971
    %v2064 = vunpack.c.l.b16 %v1972
    %v2065 = vunpack.c.h.b16 %v1972
    %v2066 = vunpack.c.l.b16 %v1973
    %v2067 = vunpack.c.h.b16 %v1973
    %v2068 = vunpack.c.l.b16 %v1974
    %v2069 = vunpack.c.h.b16 %v1974
    %v2070 = vunpack.c.l.b16 %v1975
    %v2071 = vunpack.c.h.b16 %v1975
    %v2072 = vpack.c.b16 %v2012, %v2008
    %v2073 = vpack.c.b16 %v2013, %v2009
    %v2074 = vpack.c.b16 %v2014, %v2010
    %v2075 = vpack.c.b16 %v2015, %v2011
    %v2076 = vpack.c.b16 %v2020, %v2016
    %v2077 = vpack.c.b16 %v2021, %v2017
    %v2078 = vpack.c.b16 %v2022, %v2018
    %v2079 = vpack.c.b16 %v2023, %v2019
    %v2080 = vpack.c.b16 %v2028, %v2024
    %v2081 = vpack.c.b16 %v2029, %v2025
    %v2082 = vpack.c.b16 %v2030, %v2026
    %v2083 = vpack.c.b16 %v2031, %v2027
    %v2084 = vpack.c.b16 %v2036, %v2032
    %v2085 = vpack.c.b16 %v2037, %v2033
    %v2086 = vpack.c.b16 %v2038, %v2034
    %v2087 = vpack.c.b16 %v2039, %v2035
    %v2088 = vpack.c.b16 %v2044, %v2040
    %v2089 = vpack.c.b16 %v2045, %v2041
    %v2090 = vpack.c.b16 %v2046, %v2042
    %v2091 = vpack.c.b16 %v2047, %v2043
    %v2092 = vpack.c.b16 %v2052, %v2048
    %v2093 = vpack.c.b16 %v2053, %v2049
    %v2094 = vpack.c.b16 %v2054, %v2050
    %v2095 = vpack.c.b16 %v2055, %v2051
    %v2096 = vpack.c.b16 %v2060, %v2056
    %v2097 = vpack.c.b16 %v2061, %v2057
    %v2098 = vpack.c.b16 %v2062, %v2058
    %v2099 = vpack.c.b16 %v2063, %v2059
    %v2100 = vpack.c.b16 %v2068, %v2064
    %v2101 = vpack.c.b16 %v2069, %v2065
    %v2102 = vpack.c.b16 %v2070, %v2066
    %v2103 = vpack.c.b16 %v2071, %v2067
    %2136 = vmatprep.subr.bf16.mxu0 %v2101
    %2137 = vmatpush1.bf16.msra.mxu0 %v2100
    %2138 = vmatprep.subr.bf16.mxu0 %v2097
    %2139 = vmatpush1.bf16.msra.mxu0 %v2096
    %2140 = vmatprep.subr.bf16.mxu0 %v2093
    %2141 = vmatpush1.bf16.msra.mxu0 %v2092
    %2142 = vmatprep.subr.bf16.mxu0 %v2089
    %2143 = vmatpush1.bf16.msra.mxu0 %v2088
    %2144 = vmatprep.subr.bf16.mxu0 %v2085
    %2145 = vmatpush1.bf16.msra.mxu0 %v2084
    %2146 = vmatprep.subr.bf16.mxu0 %v2081
    %2147 = vmatpush1.bf16.msra.mxu0 %v2080
    %2148 = vmatprep.subr.bf16.mxu0 %v2077
    %2149 = vmatpush1.bf16.msra.mxu0 %v2076
    %2150 = vmatprep.subr.bf16.mxu0 %v2073
    %2151 = vmatpush1.bf16.msra.mxu0 %v2072
    %2152 = vmatprep.subr.bf16.mxu0 0
    %2153 = vmatpush2.bf16.msra.mxu0 0
    %2154 = vmatprep.subr.bf16.mxu0 0
    %2155 = vmatpush2.bf16.msra.mxu0 0
    %2156 = vmatprep.subr.bf16.mxu0 0
    %2157 = vmatpush2.bf16.msra.mxu0 0
    %2158 = vmatprep.subr.bf16.mxu0 0
    %2159 = vmatpush2.bf16.msra.mxu0 0
    %2160 = vmatprep.subr.bf16.mxu0 0
    %2161 = vmatpush2.bf16.msra.mxu0 0
    %2162 = vmatprep.subr.bf16.mxu0 0
    %2163 = vmatpush2.bf16.msra.mxu0 0
    %2164 = vmatprep.subr.bf16.mxu0 0
    %2165 = vmatpush2.bf16.msra.mxu0 0
    %2166 = vmatprep.subr.bf16.mxu0 0
    %2167 = vmatpush2.bf16.msra.mxu0 0
    %2168 = vmatprep.mubr.bf16.mxu0 0
    %2169 = vmatmul.mubr.bf16.gmra.mxu0 %v1943
    %v2170 = vpop.f32.mrf.mxu0
    %v2171 = vadd.f32 0.0, %v2170
    %v2172 = vpop.f32.mrf.mxu0
    %v2173 = vadd.f32 0.0, %v2172
    %v2174 = vpop.f32.mrf.mxu0
    %v2175 = vpop.f32.mrf.mxu0
    %2176 = vdwg.mxu0
    %2177 = vmatprep.subr.bf16.mxu0 %v2103
    %2178 = vmatpush1.bf16.msra.mxu0 %v2102
    %2179 = vmatprep.subr.bf16.mxu0 %v2099
    %2180 = vmatpush1.bf16.msra.mxu0 %v2098
    %2181 = vmatprep.subr.bf16.mxu0 %v2095
    %2182 = vmatpush1.bf16.msra.mxu0 %v2094
    %2183 = vmatprep.subr.bf16.mxu0 %v2091
    %2184 = vmatpush1.bf16.msra.mxu0 %v2090
    %2185 = vmatprep.subr.bf16.mxu0 %v2087
    %2186 = vmatpush1.bf16.msra.mxu0 %v2086
    %2187 = vmatprep.subr.bf16.mxu0 %v2083
    %2188 = vmatpush1.bf16.msra.mxu0 %v2082
    %2189 = vmatprep.subr.bf16.mxu0 %v2079
    %2190 = vmatpush1.bf16.msra.mxu0 %v2078
    %2191 = vmatprep.subr.bf16.mxu0 %v2075
    %2192 = vmatpush1.bf16.msra.mxu0 %v2074
    %2193 = vmatprep.subr.bf16.mxu0 0
    %2194 = vmatpush2.bf16.msra.mxu0 0
    %2195 = vmatprep.subr.bf16.mxu0 0
    %2196 = vmatpush2.bf16.msra.mxu0 0
    %2197 = vmatprep.subr.bf16.mxu0 0
    %2198 = vmatpush2.bf16.msra.mxu0 0
    %2199 = vmatprep.subr.bf16.mxu0 0
    %2200 = vmatpush2.bf16.msra.mxu0 0
    %2201 = vmatprep.subr.bf16.mxu0 0
    %2202 = vmatpush2.bf16.msra.mxu0 0
    %2203 = vmatprep.subr.bf16.mxu0 0
    %2204 = vmatpush2.bf16.msra.mxu0 0
    %2205 = vmatprep.subr.bf16.mxu0 0
    %2206 = vmatpush2.bf16.msra.mxu0 0
    %2207 = vmatprep.subr.bf16.mxu0 0
    %2208 = vmatpush2.bf16.msra.mxu0 0
    %2209 = vmatprep.mubr.bf16.mxu0 0
    %2210 = vmatmul.mubr.bf16.gmra.mxu0 %v1943
    %v2211 = vpop.f32.mrf.mxu0
    %v2212 = vadd.f32 0.0, %v2211
    %v2213 = vpop.f32.mrf.mxu0
    %v2214 = vadd.f32 0.0, %v2213
    %v2215 = vpop.f32.mrf.mxu0
    %v2216 = vpop.f32.mrf.mxu0
    %2217 = vdwg.mxu0
    %v2218 = vadd.f32 %v1939, %v2171
    %v2219 = vadd.f32 %v1940, %v2173
    %v2220 = vadd.f32 %v1941, %v2212
    %v2221 = vadd.f32 %v1942, %v2214
    %v2222 = vxor.u32 %v2218, 2147483648
    %v2223 = vmul.f32 %v2222, 1.442695
    %v2224 = vpow.pop %v2223
    %v2225 = vadd.f32 %v2224, 1.0
    %v2226 = vrcp.pop %v2225
    %v2227 = vmul.f32 1.0, %v2226
    %v2228 = vxor.u32 %v2219, 2147483648
    %v2229 = vmul.f32 %v2228, 1.442695
    %v2230 = vpow.pop %v2229
    %v2231 = vadd.f32 %v2230, 1.0
    %v2232 = vrcp.pop %v2231
    %v2233 = vmul.f32 1.0, %v2232
    %v2234 = vtanh.pop %v2220
    %v2235 = vxor.u32 %v2221, 2147483648
    %v2236 = vmul.f32 %v2235, 1.442695
    %v2237 = vpow.pop %v2236
    %v2238 = vadd.f32 %v2237, 1.0
    %v2239 = vrcp.pop %v2238
    %v2240 = vmul.f32 1.0, %v2239
    %v2241 = vmul.f32 %v2233, %v1933
    %v2242 = vmul.f32 %v2227, %v2234
    %v2243 = vadd.f32 %v2241, %v2242
    %v2244 = vtanh.pop %v2243
    %v2245 = vmul.f32 %v2240, %v2244
    %s2246 = scalar_lea.vmem [#allocation12], 48
    %2247 = vst [vmem:[%s2246] sm:$0xff] %v2245
    %s2248 = scalar_lea.vmem [#allocation4], 224
    %v2249 = vld [vmem:[%s2248] sm:$0xff]
    %v2250 = vld [vmem:[%s2248 + $0x8] sm:$0xff]
    %v2251 = vld [vmem:[%s2248 + $0x10] sm:$0xff]
    %v2252 = vld [vmem:[%s2248 + $0x18] sm:$0xff]
    %v2253 = vpack.c.bf16 %v2245, %v2245
    %v2254 = vld [vmem:[#allocation10] sm:$0xff]
    %v2255 = vld [vmem:[#allocation10 + $0x8] sm:$0xff]
    %v2256 = vld [vmem:[#allocation10 + $0x10] sm:$0xff]
    %v2257 = vld [vmem:[#allocation10 + $0x18] sm:$0xff]
    %v2258 = vld [vmem:[#allocation10 + $0x20] sm:$0xff]
    %v2259 = vld [vmem:[#allocation10 + $0x28] sm:$0xff]
    %v2260 = vld [vmem:[#allocation10 + $0x30] sm:$0xff]
    %v2261 = vld [vmem:[#allocation10 + $0x38] sm:$0xff]
    %v2262 = vld [vmem:[#allocation10 + $0x40] sm:$0xff]
    %v2263 = vld [vmem:[#allocation10 + $0x48] sm:$0xff]
    %v2264 = vld [vmem:[#allocation10 + $0x50] sm:$0xff]
    %v2265 = vld [vmem:[#allocation10 + $0x58] sm:$0xff]
    %v2266 = vld [vmem:[#allocation10 + $0x60] sm:$0xff]
    %v2267 = vld [vmem:[#allocation10 + $0x68] sm:$0xff]
    %v2268 = vld [vmem:[#allocation10 + $0x70] sm:$0xff]
    %v2269 = vld [vmem:[#allocation10 + $0x78] sm:$0xff]
    %v2270 = vld [vmem:[#allocation10 + $0x80] sm:$0xff]
    %v2271 = vld [vmem:[#allocation10 + $0x88] sm:$0xff]
    %v2272 = vld [vmem:[#allocation10 + $0x90] sm:$0xff]
    %v2273 = vld [vmem:[#allocation10 + $0x98] sm:$0xff]
    %v2274 = vld [vmem:[#allocation10 + $0xa0] sm:$0xff]
    %v2275 = vld [vmem:[#allocation10 + $0xa8] sm:$0xff]
    %v2276 = vld [vmem:[#allocation10 + $0xb0] sm:$0xff]
    %v2277 = vld [vmem:[#allocation10 + $0xb8] sm:$0xff]
    %v2278 = vld [vmem:[#allocation10 + $0xc0] sm:$0xff]
    %v2279 = vld [vmem:[#allocation10 + $0xc8] sm:$0xff]
    %v2280 = vld [vmem:[#allocation10 + $0xd0] sm:$0xff]
    %v2281 = vld [vmem:[#allocation10 + $0xd8] sm:$0xff]
    %v2282 = vld [vmem:[#allocation10 + $0xe0] sm:$0xff]
    %v2283 = vld [vmem:[#allocation10 + $0xe8] sm:$0xff]
    %v2284 = vld [vmem:[#allocation10 + $0xf0] sm:$0xff]
    %v2285 = vld [vmem:[#allocation10 + $0xf8] sm:$0xff]
    %v2318 = vunpack.c.l.b16 %v2254
    %v2319 = vunpack.c.h.b16 %v2254
    %v2320 = vunpack.c.l.b16 %v2255
    %v2321 = vunpack.c.h.b16 %v2255
    %v2322 = vunpack.c.l.b16 %v2256
    %v2323 = vunpack.c.h.b16 %v2256
    %v2324 = vunpack.c.l.b16 %v2257
    %v2325 = vunpack.c.h.b16 %v2257
    %v2326 = vunpack.c.l.b16 %v2258
    %v2327 = vunpack.c.h.b16 %v2258
    %v2328 = vunpack.c.l.b16 %v2259
    %v2329 = vunpack.c.h.b16 %v2259
    %v2330 = vunpack.c.l.b16 %v2260
    %v2331 = vunpack.c.h.b16 %v2260
    %v2332 = vunpack.c.l.b16 %v2261
    %v2333 = vunpack.c.h.b16 %v2261
    %v2334 = vunpack.c.l.b16 %v2262
    %v2335 = vunpack.c.h.b16 %v2262
    %v2336 = vunpack.c.l.b16 %v2263
    %v2337 = vunpack.c.h.b16 %v2263
    %v2338 = vunpack.c.l.b16 %v2264
    %v2339 = vunpack.c.h.b16 %v2264
    %v2340 = vunpack.c.l.b16 %v2265
    %v2341 = vunpack.c.h.b16 %v2265
    %v2342 = vunpack.c.l.b16 %v2266
    %v2343 = vunpack.c.h.b16 %v2266
    %v2344 = vunpack.c.l.b16 %v2267
    %v2345 = vunpack.c.h.b16 %v2267
    %v2346 = vunpack.c.l.b16 %v2268
    %v2347 = vunpack.c.h.b16 %v2268
    %v2348 = vunpack.c.l.b16 %v2269
    %v2349 = vunpack.c.h.b16 %v2269
    %v2350 = vunpack.c.l.b16 %v2270
    %v2351 = vunpack.c.h.b16 %v2270
    %v2352 = vunpack.c.l.b16 %v2271
    %v2353 = vunpack.c.h.b16 %v2271
    %v2354 = vunpack.c.l.b16 %v2272
    %v2355 = vunpack.c.h.b16 %v2272
    %v2356 = vunpack.c.l.b16 %v2273
    %v2357 = vunpack.c.h.b16 %v2273
    %v2358 = vunpack.c.l.b16 %v2274
    %v2359 = vunpack.c.h.b16 %v2274
    %v2360 = vunpack.c.l.b16 %v2275
    %v2361 = vunpack.c.h.b16 %v2275
    %v2362 = vunpack.c.l.b16 %v2276
    %v2363 = vunpack.c.h.b16 %v2276
    %v2364 = vunpack.c.l.b16 %v2277
    %v2365 = vunpack.c.h.b16 %v2277
    %v2366 = vunpack.c.l.b16 %v2278
    %v2367 = vunpack.c.h.b16 %v2278
    %v2368 = vunpack.c.l.b16 %v2279
    %v2369 = vunpack.c.h.b16 %v2279
    %v2370 = vunpack.c.l.b16 %v2280
    %v2371 = vunpack.c.h.b16 %v2280
    %v2372 = vunpack.c.l.b16 %v2281
    %v2373 = vunpack.c.h.b16 %v2281
    %v2374 = vunpack.c.l.b16 %v2282
    %v2375 = vunpack.c.h.b16 %v2282
    %v2376 = vunpack.c.l.b16 %v2283
    %v2377 = vunpack.c.h.b16 %v2283
    %v2378 = vunpack.c.l.b16 %v2284
    %v2379 = vunpack.c.h.b16 %v2284
    %v2380 = vunpack.c.l.b16 %v2285
    %v2381 = vunpack.c.h.b16 %v2285
    %v2382 = vpack.c.b16 %v2322, %v2318
    %v2383 = vpack.c.b16 %v2323, %v2319
    %v2384 = vpack.c.b16 %v2324, %v2320
    %v2385 = vpack.c.b16 %v2325, %v2321
    %v2386 = vpack.c.b16 %v2330, %v2326
    %v2387 = vpack.c.b16 %v2331, %v2327
    %v2388 = vpack.c.b16 %v2332, %v2328
    %v2389 = vpack.c.b16 %v2333, %v2329
    %v2390 = vpack.c.b16 %v2338, %v2334
    %v2391 = vpack.c.b16 %v2339, %v2335
    %v2392 = vpack.c.b16 %v2340, %v2336
    %v2393 = vpack.c.b16 %v2341, %v2337
    %v2394 = vpack.c.b16 %v2346, %v2342
    %v2395 = vpack.c.b16 %v2347, %v2343
    %v2396 = vpack.c.b16 %v2348, %v2344
    %v2397 = vpack.c.b16 %v2349, %v2345
    %v2398 = vpack.c.b16 %v2354, %v2350
    %v2399 = vpack.c.b16 %v2355, %v2351
    %v2400 = vpack.c.b16 %v2356, %v2352
    %v2401 = vpack.c.b16 %v2357, %v2353
    %v2402 = vpack.c.b16 %v2362, %v2358
    %v2403 = vpack.c.b16 %v2363, %v2359
    %v2404 = vpack.c.b16 %v2364, %v2360
    %v2405 = vpack.c.b16 %v2365, %v2361
    %v2406 = vpack.c.b16 %v2370, %v2366
    %v2407 = vpack.c.b16 %v2371, %v2367
    %v2408 = vpack.c.b16 %v2372, %v2368
    %v2409 = vpack.c.b16 %v2373, %v2369
    %v2410 = vpack.c.b16 %v2378, %v2374
    %v2411 = vpack.c.b16 %v2379, %v2375
    %v2412 = vpack.c.b16 %v2380, %v2376
    %v2413 = vpack.c.b16 %v2381, %v2377
    %2446 = vmatprep.subr.bf16.mxu0 %v2411
    %2447 = vmatpush1.bf16.msra.mxu0 %v2410
    %2448 = vmatprep.subr.bf16.mxu0 %v2407
    %2449 = vmatpush1.bf16.msra.mxu0 %v2406
    %2450 = vmatprep.subr.bf16.mxu0 %v2403
    %2451 = vmatpush1.bf16.msra.mxu0 %v2402
    %2452 = vmatprep.subr.bf16.mxu0 %v2399
    %2453 = vmatpush1.bf16.msra.mxu0 %v2398
    %2454 = vmatprep.subr.bf16.mxu0 %v2395
    %2455 = vmatpush1.bf16.msra.mxu0 %v2394
    %2456 = vmatprep.subr.bf16.mxu0 %v2391
    %2457 = vmatpush1.bf16.msra.mxu0 %v2390
    %2458 = vmatprep.subr.bf16.mxu0 %v2387
    %2459 = vmatpush1.bf16.msra.mxu0 %v2386
    %2460 = vmatprep.subr.bf16.mxu0 %v2383
    %2461 = vmatpush1.bf16.msra.mxu0 %v2382
    %2462 = vmatprep.subr.bf16.mxu0 0
    %2463 = vmatpush2.bf16.msra.mxu0 0
    %2464 = vmatprep.subr.bf16.mxu0 0
    %2465 = vmatpush2.bf16.msra.mxu0 0
    %2466 = vmatprep.subr.bf16.mxu0 0
    %2467 = vmatpush2.bf16.msra.mxu0 0
    %2468 = vmatprep.subr.bf16.mxu0 0
    %2469 = vmatpush2.bf16.msra.mxu0 0
    %2470 = vmatprep.subr.bf16.mxu0 0
    %2471 = vmatpush2.bf16.msra.mxu0 0
    %2472 = vmatprep.subr.bf16.mxu0 0
    %2473 = vmatpush2.bf16.msra.mxu0 0
    %2474 = vmatprep.subr.bf16.mxu0 0
    %2475 = vmatpush2.bf16.msra.mxu0 0
    %2476 = vmatprep.subr.bf16.mxu0 0
    %2477 = vmatpush2.bf16.msra.mxu0 0
    %2478 = vmatprep.mubr.bf16.mxu0 0
    %2479 = vmatmul.mubr.bf16.gmra.mxu0 %v2253
    %v2480 = vpop.f32.mrf.mxu0
    %v2481 = vadd.f32 0.0, %v2480
    %v2482 = vpop.f32.mrf.mxu0
    %v2483 = vadd.f32 0.0, %v2482
    %v2484 = vpop.f32.mrf.mxu0
    %v2485 = vpop.f32.mrf.mxu0
    %2486 = vdwg.mxu0
    %2487 = vmatprep.subr.bf16.mxu0 %v2413
    %2488 = vmatpush1.bf16.msra.mxu0 %v2412
    %2489 = vmatprep.subr.bf16.mxu0 %v2409
    %2490 = vmatpush1.bf16.msra.mxu0 %v2408
    %2491 = vmatprep.subr.bf16.mxu0 %v2405
    %2492 = vmatpush1.bf16.msra.mxu0 %v2404
    %2493 = vmatprep.subr.bf16.mxu0 %v2401
    %2494 = vmatpush1.bf16.msra.mxu0 %v2400
    %2495 = vmatprep.subr.bf16.mxu0 %v2397
    %2496 = vmatpush1.bf16.msra.mxu0 %v2396
    %2497 = vmatprep.subr.bf16.mxu0 %v2393
    %2498 = vmatpush1.bf16.msra.mxu0 %v2392
    %2499 = vmatprep.subr.bf16.mxu0 %v2389
    %2500 = vmatpush1.bf16.msra.mxu0 %v2388
    %2501 = vmatprep.subr.bf16.mxu0 %v2385
    %2502 = vmatpush1.bf16.msra.mxu0 %v2384
    %2503 = vmatprep.subr.bf16.mxu0 0
    %2504 = vmatpush2.bf16.msra.mxu0 0
    %2505 = vmatprep.subr.bf16.mxu0 0
    %2506 = vmatpush2.bf16.msra.mxu0 0
    %2507 = vmatprep.subr.bf16.mxu0 0
    %2508 = vmatpush2.bf16.msra.mxu0 0
    %2509 = vmatprep.subr.bf16.mxu0 0
    %2510 = vmatpush2.bf16.msra.mxu0 0
    %2511 = vmatprep.subr.bf16.mxu0 0
    %2512 = vmatpush2.bf16.msra.mxu0 0
    %2513 = vmatprep.subr.bf16.mxu0 0
    %2514 = vmatpush2.bf16.msra.mxu0 0
    %2515 = vmatprep.subr.bf16.mxu0 0
    %2516 = vmatpush2.bf16.msra.mxu0 0
    %2517 = vmatprep.subr.bf16.mxu0 0
    %2518 = vmatpush2.bf16.msra.mxu0 0
    %2519 = vmatprep.mubr.bf16.mxu0 0
    %2520 = vmatmul.mubr.bf16.gmra.mxu0 %v2253
    %v2521 = vpop.f32.mrf.mxu0
    %v2522 = vadd.f32 0.0, %v2521
    %v2523 = vpop.f32.mrf.mxu0
    %v2524 = vadd.f32 0.0, %v2523
    %v2525 = vpop.f32.mrf.mxu0
    %v2526 = vpop.f32.mrf.mxu0
    %2527 = vdwg.mxu0
    %v2528 = vadd.f32 %v2249, %v2481
    %v2529 = vadd.f32 %v2250, %v2483
    %v2530 = vadd.f32 %v2251, %v2522
    %v2531 = vadd.f32 %v2252, %v2524
    %v2532 = vxor.u32 %v2528, 2147483648
    %v2533 = vmul.f32 %v2532, 1.442695
    %v2534 = vpow.pop %v2533
    %v2535 = vadd.f32 %v2534, 1.0
    %v2536 = vrcp.pop %v2535
    %v2537 = vmul.f32 1.0, %v2536
    %v2538 = vxor.u32 %v2529, 2147483648
    %v2539 = vmul.f32 %v2538, 1.442695
    %v2540 = vpow.pop %v2539
    %v2541 = vadd.f32 %v2540, 1.0
    %v2542 = vrcp.pop %v2541
    %v2543 = vmul.f32 1.0, %v2542
    %v2544 = vtanh.pop %v2530
    %v2545 = vxor.u32 %v2531, 2147483648
    %v2546 = vmul.f32 %v2545, 1.442695
    %v2547 = vpow.pop %v2546
    %v2548 = vadd.f32 %v2547, 1.0
    %v2549 = vrcp.pop %v2548
    %v2550 = vmul.f32 1.0, %v2549
    %v2551 = vmul.f32 %v2543, %v2243
    %v2552 = vmul.f32 %v2537, %v2544
    %v2553 = vadd.f32 %v2551, %v2552
    %v2554 = vtanh.pop %v2553
    %v2555 = vmul.f32 %v2550, %v2554
    %s2556 = scalar_lea.vmem [#allocation12], 56
    %2557 = vst [vmem:[%s2556] sm:$0xff] %v2555
    %2558 = vst [vmem:[#allocation2] sm:$0xff] %v2555
    %2559 = vst [vmem:[#allocation3] sm:$0xff] %v2553
    // Predicated region
    $region38: #{tpu_custom_call.1} parent=1 // pred_check
      _
    $region39: #{tpu_custom_call.1} parent=1 // pred_check_branch
      %2561 = sbr.rel (0) target = $region41
    $region40: #{tpu_custom_call.1} parent=1 // pred_region
      %s2563 = ssub.s32 1024, 1024
      %2564 = vsyncadd [#allocation6], %s2563
      %s2565 = sshll.u32 [#allocation12], 4
      %s2566 = int_to_ptr.vmem [resolvable:$true] %s2565
      %2571 = dma.vmem_to_hbm [thread:$0]  %s2566, 1024, %s4, [#allocation6], 128, 128, 8
    $region41: #{tpu_custom_call.1} parent=1 // pred_fallthru
      _
    // Predicated region
    $region42: #{tpu_custom_call.1} parent=1 // pred_check
      _
    $region43: #{tpu_custom_call.1} parent=1 // pred_check_branch
      %2573 = sbr.rel (0) target = $region45
    $region44: #{tpu_custom_call.1} parent=1 // pred_region
      %2574 = dma.done [#allocation6], 1024
    $region45: #{tpu_custom_call.1} parent=1 // pred_fallthru
      _
    %2575 = vsyncpa [#allocation5], 1
    %2576 = vsyncpa [#allocation8], 1
    %2577 = vsyncpa [#allocation11], 1
    %2578 = vsyncpa [#allocation6], 1

</llo_original>
